<compile_context>
chip_gen: v5e
topology: v5e:2x2
jax: 0.10.0
libtpu: 0.0.40
codegen_flags: <defaults>
</compile_context>

<pallas_src>
import jax
import jax.numpy as jnp
from jax.experimental import pallas as pl
from jax.experimental.pallas import tpu as pltpu


def _round_up(x, m):
    return (x + m - 1) // m * m


def _tri_affine_kernel(h_ref,
                       wcat_ref, bcat_ref,
                       w1t_ref, w1b_ref,
                       w2t_ref, w2b_ref,
                       w3t_ref, w3b_ref,
                       out_ref):
    """Fused (Linear -> LeakyReLU -> low-rank projection) x 3 for one row tile."""
    n_out_p, rank_p = w1t_ref.shape

    h = h_ref[...]                                                 # (tm, n_in) bf16
    # One wide MXU push for all three MLP input projections (f32 accumulation).
    z = jnp.dot(h, wcat_ref[...], preferred_element_type=jnp.float32)
    z = z + bcat_ref[...]                                          # f32 bias add (VPU)
    z = jnp.maximum(z, 0.1 * z)                                    # LeakyReLU(0.1), 1 VALU op
    zb = z.astype(jnp.bfloat16)                                    # bf16 operand for 2nd MXU pass

    tops = (w1t_ref, w2t_ref, w3t_ref)
    bots = (w1b_ref, w2b_ref, w3b_ref)
    for i in range(3):                                             # unrolled at trace time
        zi = zb[:, i * n_out_p:(i + 1) * n_out_p]                  # lane-aligned static slice
        yi = jnp.dot(zi, tops[i][...], preferred_element_type=jnp.float32)
        yi = yi + bots[i][...]                                     # folded "ones" row (f32)
        out_ref[:, i * rank_p:(i + 1) * rank_p] = yi               # lane-dense, unmasked store


def decomposed_triaffine_scorer(h, params, *, tm=256):
    """h: [B, T, n_in] float32. Returns (left, mid, right), each [B, T, rank] float32."""
    B, T, n_in = h.shape
    (wl, bl, w1), (wm, bm, w2), (wr, br, w3) = params
    n_out = wl.shape[1]
    rank = w1.shape[1]

    n_out_p = _round_up(n_out, 128)           # lane-aligned per-branch hidden width
    rank_p = _round_up(rank, 128)             # lane-aligned per-branch output width

    M = B * T
    M_p = _round_up(M, tm)

    # Rows zero-padded to a tile multiple; matmul LHS cast to bf16 (halves DMA bytes).
    h2 = jnp.zeros((M_p, n_in), jnp.bfloat16).at[:M].set(
        h.reshape(M, n_in).astype(jnp.bfloat16))

    def pad_cols(x, cols):
        return jnp.pad(x, ((0, 0), (0, cols - x.shape[1])))

    # Fused + padded first-layer weight/bias: [Wl | Wm | Wr] -> (n_in, 3*n_out_p).
    w_cat = jnp.concatenate(
        [pad_cols(w, n_out_p) for w in (wl, wm, wr)], axis=1).astype(jnp.bfloat16)
    b_cat = jnp.concatenate(
        [jnp.pad(b, (0, n_out_p - n_out)) for b in (bl, bm, br)]
    ).reshape(1, 3 * n_out_p).astype(jnp.float32)

    # Each (n_out+1, rank) tri-affine factor -> padded top block (bf16) + last row (f32).
    def split(w):
        top = jnp.pad(w[:n_out], ((0, n_out_p - n_out), (0, rank_p - rank)))
        bot = jnp.pad(w[n_out:n_out + 1], ((0, 0), (0, rank_p - rank)))
        return top.astype(jnp.bfloat16), bot.astype(jnp.float32)

    w1t, w1b = split(w1)
    w2t, w2b = split(w2)
    w3t, w3b = split(w3)

    weight_args = [w_cat, b_cat, w1t, w1b, w2t, w2b, w3t, w3b]

    row_spec = pl.BlockSpec((tm, n_in), lambda i: (i, 0))
    out_spec = pl.BlockSpec((tm, 3 * rank_p), lambda i: (i, 0))

    def full_spec(a):
        # Whole-array block, constant index (resident across the grid).
        return pl.BlockSpec(a.shape, lambda i: (0, 0))

    flops = 2 * M_p * n_in * (3 * n_out_p) + 2 * M_p * (3 * n_out_p) * rank_p
    bytes_accessed = (h2.size * h2.dtype.itemsize
                      + sum(a.size * a.dtype.itemsize for a in weight_args)
                      + M_p * 3 * rank_p * 4)

    fn = pl.pallas_call(
        _tri_affine_kernel,
        out_shape=jax.ShapeDtypeStruct((M_p, 3 * rank_p), jnp.float32),
        grid_spec=pltpu.PrefetchScalarGridSpec(
            num_scalar_prefetch=0,
            grid=(M_p // tm,),
            in_specs=[row_spec] + [full_spec(a) for a in weight_args],
            out_specs=out_spec,
        ),
        compiler_params=pltpu.CompilerParams(
            dimension_semantics=("parallel",),
            vmem_limit_bytes=48 * 1024 * 1024,
        ),
        cost_estimate=pl.CostEstimate(
            flops=flops, transcendentals=0, bytes_accessed=bytes_accessed),
    )

    packed = fn(h2, *weight_args)   # (M_p, 3*rank_p) f32, lane-dense

    outs = tuple(
        packed[:M, i * rank_p:i * rank_p + rank].reshape(B, T, rank)
        for i in range(3))
    return outs


def _reference(h, params):
    """Pure-JAX f32 reference mirroring the PyTorch forward."""
    def mlp(x, w, b):
        z = x @ w + b
        return jnp.where(z >= 0, z, 0.1 * z)

    (wl, bl, w1), (wm, bm, w2), (wr, br, w3) = params
    outs = []
    for (w, b, W) in ((wl, bl, w1), (wm, bm, w2), (wr, br, w3)):
        y = mlp(h, w, b)
        y = jnp.concatenate([y, jnp.ones_like(y[..., :1])], axis=-1)
        outs.append(y @ W)
    return tuple(outs)


def _make_params(key, n_in, n_out, rank):
    ks = jax.random.split(key, 9)
    scale_lin = 1.0 / jnp.sqrt(n_in)
    scale_w = 0.05
    branches = []
    for i in range(3):
        w_mlp = jax.random.normal(ks[3 * i + 0], (n_in, n_out), jnp.float32) * scale_lin
        b_mlp = jax.random.normal(ks[3 * i + 1], (n_out,), jnp.float32) * scale_lin
        w_tri = jax.random.normal(ks[3 * i + 2], (n_out + 1, rank), jnp.float32) * scale_w
        branches.append((w_mlp, b_mlp, w_tri))
    return tuple(branches)


if __name__ == "__main__":
    # Small shapes consistent with the module's forward: h is [batch, seq, n_in].
    # Chosen to exercise row padding (400 -> 512), a 2-step grid, and
    # lane padding (n_out/rank not multiples of 128).
    B, T = 2, 200
    n_in, n_out, rank = 64, 48, 40

    key = jax.random.PRNGKey(0)
    k_h, k_p = jax.random.split(key)
    h = jax.random.normal(k_h, (B, T, n_in), jnp.float32)
    params = _make_params(k_p, n_in, n_out, rank)

    left, mid, right = decomposed_triaffine_scorer(h, params, tm=256)
    jax.block_until_ready((left, mid, right))

    ref_left, ref_mid, ref_right = _reference(h, params)
    assert left.shape == (B, T, rank)
    # Tolerances loosened vs the pure-f32 version because matmul operands are bf16
    # (accumulation stays f32 on the MXU).
    assert jnp.allclose(left, ref_left, atol=5e-2, rtol=5e-2)
    assert jnp.allclose(mid, ref_mid, atol=5e-2, rtol=5e-2)
    assert jnp.allclose(right, ref_right, atol=5e-2, rtol=5e-2)

    print("KERNEL_OK")
</pallas_src>

<mosaic_0001>
module attributes {stable_mosaic.version = 11 : i64} {
  func.func @_tri_affine_kernel(%arg0: i32, %arg1: memref<256x64xbf16, #tpu.memory_space<vmem>>, %arg2: memref<64x384xbf16, #tpu.memory_space<vmem>>, %arg3: memref<1x384xf32, #tpu.memory_space<vmem>>, %arg4: memref<128x128xbf16, #tpu.memory_space<vmem>>, %arg5: memref<1x128xf32, #tpu.memory_space<vmem>>, %arg6: memref<128x128xbf16, #tpu.memory_space<vmem>>, %arg7: memref<1x128xf32, #tpu.memory_space<vmem>>, %arg8: memref<128x128xbf16, #tpu.memory_space<vmem>>, %arg9: memref<1x128xf32, #tpu.memory_space<vmem>>, %arg10: memref<256x384xf32, #tpu.memory_space<vmem>>) attributes {dimension_semantics = [#tpu.dimension_semantics<parallel>], iteration_bounds = array<i64: 2>, scalar_prefetch = 0 : i64, scratch_operands = 0 : i64, tpu.core_type = #tpu.core_type<tc>, window_params = [{transform_indices = @transform_0, window_bounds = array<i64: 256, 64>}, {pipeline_mode = #tpu.pipeline_mode<synchronous>, transform_indices = @transform_1, window_bounds = array<i64: 64, 384>}, {pipeline_mode = #tpu.pipeline_mode<synchronous>, transform_indices = @transform_2, window_bounds = array<i64: 1, 384>}, {pipeline_mode = #tpu.pipeline_mode<synchronous>, transform_indices = @transform_3, window_bounds = array<i64: 128, 128>}, {pipeline_mode = #tpu.pipeline_mode<synchronous>, transform_indices = @transform_4, window_bounds = array<i64: 1, 128>}, {pipeline_mode = #tpu.pipeline_mode<synchronous>, transform_indices = @transform_5, window_bounds = array<i64: 128, 128>}, {pipeline_mode = #tpu.pipeline_mode<synchronous>, transform_indices = @transform_6, window_bounds = array<i64: 1, 128>}, {pipeline_mode = #tpu.pipeline_mode<synchronous>, transform_indices = @transform_7, window_bounds = array<i64: 128, 128>}, {pipeline_mode = #tpu.pipeline_mode<synchronous>, transform_indices = @transform_8, window_bounds = array<i64: 1, 128>}, {transform_indices = @transform_9, window_bounds = array<i64: 256, 384>}]} {
    %c0 = arith.constant 0 : index
    %c0_0 = arith.constant 0 : index
    %0 = vector.load %arg1[%c0, %c0_0] : memref<256x64xbf16, #tpu.memory_space<vmem>>, vector<256x64xbf16>
    %c0_1 = arith.constant 0 : index
    %c0_2 = arith.constant 0 : index
    %1 = vector.load %arg2[%c0_1, %c0_2] : memref<64x384xbf16, #tpu.memory_space<vmem>>, vector<64x384xbf16>
    %cst = arith.constant dense<0.000000e+00> : vector<256x384xf32>
    %2 = tpu.matmul %0, %1, %cst {dimension_numbers = #tpu.dot_dimension_numbers<[1], [0], [0], [1], [0, 0, 1, 1], [], []>} : vector<256x64xbf16>, vector<64x384xbf16>, vector<256x384xf32> -> vector<256x384xf32>
    %c0_3 = arith.constant 0 : index
    %c0_4 = arith.constant 0 : index
    %3 = vector.load %arg3[%c0_3, %c0_4] : memref<1x384xf32, #tpu.memory_space<vmem>>, vector<1x384xf32>
    %4 = vector.broadcast %3 : vector<1x384xf32> to vector<256x384xf32>
    %5 = arith.addf %2, %4 : vector<256x384xf32>
    %cst_5 = arith.constant 1.000000e-01 : f32
    %6 = vector.broadcast %cst_5 : f32 to vector<256x384xf32>
    %7 = arith.mulf %6, %5 : vector<256x384xf32>
    %8 = arith.maximumf %5, %7 : vector<256x384xf32>
    %9 = arith.truncf %8 : vector<256x384xf32> to vector<256x384xbf16>
    %10 = vector.extract_strided_slice %9 {offsets = [0, 0], sizes = [256, 128], strides = [1, 1]} : vector<256x384xbf16> to vector<256x128xbf16>
    %c0_6 = arith.constant 0 : index
    %c0_7 = arith.constant 0 : index
    %11 = vector.load %arg4[%c0_6, %c0_7] : memref<128x128xbf16, #tpu.memory_space<vmem>>, vector<128x128xbf16>
    %cst_8 = arith.constant dense<0.000000e+00> : vector<256x128xf32>
    %12 = tpu.matmul %10, %11, %cst_8 {dimension_numbers = #tpu.dot_dimension_numbers<[1], [0], [0], [1], [0, 0, 1, 1], [], []>} : vector<256x128xbf16>, vector<128x128xbf16>, vector<256x128xf32> -> vector<256x128xf32>
    %c0_9 = arith.constant 0 : index
    %c0_10 = arith.constant 0 : index
    %13 = vector.load %arg5[%c0_9, %c0_10] : memref<1x128xf32, #tpu.memory_space<vmem>>, vector<1x128xf32>
    %14 = vector.broadcast %13 : vector<1x128xf32> to vector<256x128xf32>
    %15 = arith.addf %12, %14 : vector<256x128xf32>
    %c0_11 = arith.constant 0 : index
    %c0_12 = arith.constant 0 : index
    %16 = vector.load %arg10[%c0_11, %c0_12] : memref<256x384xf32, #tpu.memory_space<vmem>>, vector<256x128xf32>
    tpu.vector_store %arg10[%c0_11, %c0_12], %15 {strides = array<i32>} : memref<256x384xf32, #tpu.memory_space<vmem>>, vector<256x128xf32>,
    %17 = vector.extract_strided_slice %9 {offsets = [0, 128], sizes = [256, 128], strides = [1, 1]} : vector<256x384xbf16> to vector<256x128xbf16>
    %c0_13 = arith.constant 0 : index
    %c0_14 = arith.constant 0 : index
    %18 = vector.load %arg6[%c0_13, %c0_14] : memref<128x128xbf16, #tpu.memory_space<vmem>>, vector<128x128xbf16>
    %cst_15 = arith.constant dense<0.000000e+00> : vector<256x128xf32>
    %19 = tpu.matmul %17, %18, %cst_15 {dimension_numbers = #tpu.dot_dimension_numbers<[1], [0], [0], [1], [0, 0, 1, 1], [], []>} : vector<256x128xbf16>, vector<128x128xbf16>, vector<256x128xf32> -> vector<256x128xf32>
    %c0_16 = arith.constant 0 : index
    %c0_17 = arith.constant 0 : index
    %20 = vector.load %arg7[%c0_16, %c0_17] : memref<1x128xf32, #tpu.memory_space<vmem>>, vector<1x128xf32>
    %21 = vector.broadcast %20 : vector<1x128xf32> to vector<256x128xf32>
    %22 = arith.addf %19, %21 : vector<256x128xf32>
    %c0_18 = arith.constant 0 : index
    %c128 = arith.constant 128 : index
    %23 = vector.load %arg10[%c0_18, %c128] : memref<256x384xf32, #tpu.memory_space<vmem>>, vector<256x128xf32>
    tpu.vector_store %arg10[%c0_18, %c128], %22 {strides = array<i32>} : memref<256x384xf32, #tpu.memory_space<vmem>>, vector<256x128xf32>,
    %24 = vector.extract_strided_slice %9 {offsets = [0, 256], sizes = [256, 128], strides = [1, 1]} : vector<256x384xbf16> to vector<256x128xbf16>
    %c0_19 = arith.constant 0 : index
    %c0_20 = arith.constant 0 : index
    %25 = vector.load %arg8[%c0_19, %c0_20] : memref<128x128xbf16, #tpu.memory_space<vmem>>, vector<128x128xbf16>
    %cst_21 = arith.constant dense<0.000000e+00> : vector<256x128xf32>
    %26 = tpu.matmul %24, %25, %cst_21 {dimension_numbers = #tpu.dot_dimension_numbers<[1], [0], [0], [1], [0, 0, 1, 1], [], []>} : vector<256x128xbf16>, vector<128x128xbf16>, vector<256x128xf32> -> vector<256x128xf32>
    %c0_22 = arith.constant 0 : index
    %c0_23 = arith.constant 0 : index
    %27 = vector.load %arg9[%c0_22, %c0_23] : memref<1x128xf32, #tpu.memory_space<vmem>>, vector<1x128xf32>
    %28 = vector.broadcast %27 : vector<1x128xf32> to vector<256x128xf32>
    %29 = arith.addf %26, %28 : vector<256x128xf32>
    %c0_24 = arith.constant 0 : index
    %c256 = arith.constant 256 : index
    %30 = vector.load %arg10[%c0_24, %c256] : memref<256x384xf32, #tpu.memory_space<vmem>>, vector<256x128xf32>
    tpu.vector_store %arg10[%c0_24, %c256], %29 {strides = array<i32>} : memref<256x384xf32, #tpu.memory_space<vmem>>, vector<256x128xf32>,
    return
  }
  func.func @transform_0(%arg0: i32) -> (i32, i32) {
    %c0_i32 = arith.constant 0 : i32
    %c0_i32_0 = arith.constant 0 : i32
    return %arg0, %c0_i32 : i32, i32
  }
  func.func @transform_1(%arg0: i32) -> (i32, i32) {
    %c0_i32 = arith.constant 0 : i32
    %c0_i32_0 = arith.constant 0 : i32
    %c0_i32_1 = arith.constant 0 : i32
    return %c0_i32, %c0_i32_0 : i32, i32
  }
  func.func @transform_2(%arg0: i32) -> (i32, i32) {
    %c0_i32 = arith.constant 0 : i32
    %c0_i32_0 = arith.constant 0 : i32
    %c0_i32_1 = arith.constant 0 : i32
    return %c0_i32, %c0_i32_0 : i32, i32
  }
  func.func @transform_3(%arg0: i32) -> (i32, i32) {
    %c0_i32 = arith.constant 0 : i32
    %c0_i32_0 = arith.constant 0 : i32
    %c0_i32_1 = arith.constant 0 : i32
    return %c0_i32, %c0_i32_0 : i32, i32
  }
  func.func @transform_4(%arg0: i32) -> (i32, i32) {
    %c0_i32 = arith.constant 0 : i32
    %c0_i32_0 = arith.constant 0 : i32
    %c0_i32_1 = arith.constant 0 : i32
    return %c0_i32, %c0_i32_0 : i32, i32
  }
  func.func @transform_5(%arg0: i32) -> (i32, i32) {
    %c0_i32 = arith.constant 0 : i32
    %c0_i32_0 = arith.constant 0 : i32
    %c0_i32_1 = arith.constant 0 : i32
    return %c0_i32, %c0_i32_0 : i32, i32
  }
  func.func @transform_6(%arg0: i32) -> (i32, i32) {
    %c0_i32 = arith.constant 0 : i32
    %c0_i32_0 = arith.constant 0 : i32
    %c0_i32_1 = arith.constant 0 : i32
    return %c0_i32, %c0_i32_0 : i32, i32
  }
  func.func @transform_7(%arg0: i32) -> (i32, i32) {
    %c0_i32 = arith.constant 0 : i32
    %c0_i32_0 = arith.constant 0 : i32
    %c0_i32_1 = arith.constant 0 : i32
    return %c0_i32, %c0_i32_0 : i32, i32
  }
  func.func @transform_8(%arg0: i32) -> (i32, i32) {
    %c0_i32 = arith.constant 0 : i32
    %c0_i32_0 = arith.constant 0 : i32
    %c0_i32_1 = arith.constant 0 : i32
    return %c0_i32, %c0_i32_0 : i32, i32
  }
  func.func @transform_9(%arg0: i32) -> (i32, i32) {
    %c0_i32 = arith.constant 0 : i32
    %c0_i32_0 = arith.constant 0 : i32
    return %arg0, %c0_i32 : i32, i32
  }
}

</mosaic_0001>

<llo_original>
// kernel: tpu_custom_call.1
$region0: #{tpu_custom_call.1}
  #allocation0 [shape = 'u32[]', space=smem, size = 0x4, offset = 0x4, fixed_abs, tag = 'smem constant byte address 0x4 - core index']
  #allocation1 [shape = 'u32[72,128]{1,0:T(1,128)}', space=vmem, size = 0x9000, scoped, tag = 'internal scratch']
  %s0 = inlined_call_operand.vmem [shape: bf16[512,64], index: 0, kind: input, shape index: {}]
  %s1 = inlined_call_operand.vmem [shape: bf16[64,384], index: 1, kind: input, shape index: {}]
  %s2 = inlined_call_operand.vmem [shape: f32[1,384], index: 2, kind: input, shape index: {}]
  %s3 = inlined_call_operand.vmem [shape: bf16[128,128], index: 3, kind: input, shape index: {}]
  %s4 = inlined_call_operand.vmem [shape: f32[1,128], index: 4, kind: input, shape index: {}]
  %s5 = inlined_call_operand.vmem [shape: bf16[128,128], index: 5, kind: input, shape index: {}]
  %s6 = inlined_call_operand.vmem [shape: f32[1,128], index: 6, kind: input, shape index: {}]
  %s7 = inlined_call_operand.vmem [shape: bf16[128,128], index: 7, kind: input, shape index: {}]
  %s8 = inlined_call_operand.vmem [shape: f32[1,128], index: 8, kind: input, shape index: {}]
  %s9 = inlined_call_operand.hbm [shape: f32[512,384], index: 9, kind: output, shape index: {}]
  %s10 = sld [smem:[#allocation0]]
  $region69: #{tpu_custom_call.1} parent=0
    _
  %s12 = ssub.s32 1, %s10
  %s13 = scalar_select 0, %s12, %s10
  $region1: #{tpu_custom_call.1} parent=0
    #allocation2 [shape = 'u8[786432]{0}', space=vmem, size = 0xc0000, scoped, tag = 'output window, operand 0']
    #allocation3 [shape = 's32[2]{0}', space=sflag, size = 0x8, scoped, tag = 'scoped memory for tpu_custom_call.1']
    %14 = vsyncpa [#allocation3], 0
    %s15 = scalar_lea.sflag [#allocation3], 1
    %16 = vsyncpa %s15, 0
    loop: start=0, step=1, limit=4
    $region2: #{tpu_custom_call.1} parent=1 // loop_pre_header
      _
    $region3: #{tpu_custom_call.1} parent=1 // loop_header
      %s18 = sphi 0, %s22
      %p19 = scmp.ge.s32.totalorder %s18, 4
      %s28 = sphi 0, %s30
      %s31 = sphi 0, %s28
      %s32 = sphi 0, %s31
      %s48 = sphi 0, %s32
      %s52 = sphi 0, %s52
      %s54 = sphi 0, %s52
      %s55 = sphi 0, %s54
      %s69 = sphi 0, %s55
      %s73 = sphi 0, %s73
      %s75 = sphi 0, %s73
      %s76 = sphi 0, %s75
      %s90 = sphi 0, %s76
      %s94 = sphi 0, %s94
      %s96 = sphi 0, %s94
      %s97 = sphi 0, %s96
      %s111 = sphi 0, %s97
      %s115 = sphi 0, %s115
      %s117 = sphi 0, %s115
      %s118 = sphi 0, %s117
      %s132 = sphi 0, %s118
      %s136 = sphi 0, %s136
      %s138 = sphi 0, %s136
      %s139 = sphi 0, %s138
      %s153 = sphi 0, %s139
      %s157 = sphi 0, %s157
      %s159 = sphi 0, %s157
      %s160 = sphi 0, %s159
      %s174 = sphi 0, %s160
      %s178 = sphi 0, %s178
      %s180 = sphi 0, %s178
      %s181 = sphi 0, %s180
      %s195 = sphi 0, %s181
      %s199 = sphi 0, %s199
      %s201 = sphi 0, %s199
      %s202 = sphi 0, %s201
      %s216 = sphi 0, %s202
      %s222 = sphi 0, %s224
      %s225 = sphi 0, %s222
      %s226 = sphi 0, %s225
      %s242 = sphi 0, %s226
    $region4: #{tpu_custom_call.1} parent=1 // loop_header_branch
      %21 = sbr.rel (%p19) target = $region8
    $region5: #{tpu_custom_call.1} parent=1 // loop_body
      %s23 = ssub.s32 %s18, 1
      %s24 = ssub.s32 %s18, 2
      %s25 = sadd.s32 %s18, 1
      %s26 = ssub.s32 %s18, %s25
      %p27 = scmp.eq.s32.totalorder %s26, 0
      %s29 = sadd.s32 %s28, 1
      %s30 = scalar_select %p27, %s28, %s29
      %p33 = pneg %p27
      %p34 = scmp.eq.s32.totalorder %s18, 1
      %p35 = por %p33, %p34
      %p36 = scmp.ne.s32.totalorder %s28, %s31
      %p37 = scmp.eq.s32.totalorder %s18, 0
      %p38 = por %p36, %p37
      %p39 = scmp.ne.s32.totalorder %s28, %s31
      %p40 = scmp.eq.s32.totalorder %s23, 1
      %p41 = por %p39, %p40
      %p42 = scmp.ne.s32.totalorder %s31, %s32
      %p43 = scmp.eq.s32.totalorder %s23, 0
      %p44 = por %p42, %p43
      %p45 = scmp.ne.s32.totalorder %s31, %s32
      %p46 = scmp.eq.s32.totalorder %s24, 1
      %p47 = por %p45, %p46
      %p49 = scmp.ne.s32.totalorder %s32, %s48
      %p50 = scmp.eq.s32.totalorder %s24, 0
      %p51 = por %p49, %p50
      %s53 = sadd.s32 %s52, 1
      %p56 = scmp.eq.s32.totalorder %s18, 1
      %p57 = scmp.ne.s32.totalorder %s52, %s54
      %p58 = scmp.eq.s32.totalorder %s18, 0
      %p59 = por %p57, %p58
      %p60 = scmp.ne.s32.totalorder %s52, %s54
      %p61 = scmp.eq.s32.totalorder %s23, 1
      %p62 = por %p60, %p61
      %p63 = scmp.ne.s32.totalorder %s54, %s55
      %p64 = scmp.eq.s32.totalorder %s23, 0
      %p65 = por %p63, %p64
      %p66 = scmp.ne.s32.totalorder %s54, %s55
      %p67 = scmp.eq.s32.totalorder %s24, 1
      %p68 = por %p66, %p67
      %p70 = scmp.ne.s32.totalorder %s55, %s69
      %p71 = scmp.eq.s32.totalorder %s24, 0
      %p72 = por %p70, %p71
      %s74 = sadd.s32 %s73, 1
      %p77 = scmp.eq.s32.totalorder %s18, 1
      %p78 = scmp.ne.s32.totalorder %s73, %s75
      %p79 = scmp.eq.s32.totalorder %s18, 0
      %p80 = por %p78, %p79
      %p81 = scmp.ne.s32.totalorder %s73, %s75
      %p82 = scmp.eq.s32.totalorder %s23, 1
      %p83 = por %p81, %p82
      %p84 = scmp.ne.s32.totalorder %s75, %s76
      %p85 = scmp.eq.s32.totalorder %s23, 0
      %p86 = por %p84, %p85
      %p87 = scmp.ne.s32.totalorder %s75, %s76
      %p88 = scmp.eq.s32.totalorder %s24, 1
      %p89 = por %p87, %p88
      %p91 = scmp.ne.s32.totalorder %s76, %s90
      %p92 = scmp.eq.s32.totalorder %s24, 0
      %p93 = por %p91, %p92
      %s95 = sadd.s32 %s94, 1
      %p98 = scmp.eq.s32.totalorder %s18, 1
      %p99 = scmp.ne.s32.totalorder %s94, %s96
      %p100 = scmp.eq.s32.totalorder %s18, 0
      %p101 = por %p99, %p100
      %p102 = scmp.ne.s32.totalorder %s94, %s96
      %p103 = scmp.eq.s32.totalorder %s23, 1
      %p104 = por %p102, %p103
      %p105 = scmp.ne.s32.totalorder %s96, %s97
      %p106 = scmp.eq.s32.totalorder %s23, 0
      %p107 = por %p105, %p106
      %p108 = scmp.ne.s32.totalorder %s96, %s97
      %p109 = scmp.eq.s32.totalorder %s24, 1
      %p110 = por %p108, %p109
      %p112 = scmp.ne.s32.totalorder %s97, %s111
      %p113 = scmp.eq.s32.totalorder %s24, 0
      %p114 = por %p112, %p113
      %s116 = sadd.s32 %s115, 1
      %p119 = scmp.eq.s32.totalorder %s18, 1
      %p120 = scmp.ne.s32.totalorder %s115, %s117
      %p121 = scmp.eq.s32.totalorder %s18, 0
      %p122 = por %p120, %p121
      %p123 = scmp.ne.s32.totalorder %s115, %s117
      %p124 = scmp.eq.s32.totalorder %s23, 1
      %p125 = por %p123, %p124
      %p126 = scmp.ne.s32.totalorder %s117, %s118
      %p127 = scmp.eq.s32.totalorder %s23, 0
      %p128 = por %p126, %p127
      %p129 = scmp.ne.s32.totalorder %s117, %s118
      %p130 = scmp.eq.s32.totalorder %s24, 1
      %p131 = por %p129, %p130
      %p133 = scmp.ne.s32.totalorder %s118, %s132
      %p134 = scmp.eq.s32.totalorder %s24, 0
      %p135 = por %p133, %p134
      %s137 = sadd.s32 %s136, 1
      %p140 = scmp.eq.s32.totalorder %s18, 1
      %p141 = scmp.ne.s32.totalorder %s136, %s138
      %p142 = scmp.eq.s32.totalorder %s18, 0
      %p143 = por %p141, %p142
      %p144 = scmp.ne.s32.totalorder %s136, %s138
      %p145 = scmp.eq.s32.totalorder %s23, 1
      %p146 = por %p144, %p145
      %p147 = scmp.ne.s32.totalorder %s138, %s139
      %p148 = scmp.eq.s32.totalorder %s23, 0
      %p149 = por %p147, %p148
      %p150 = scmp.ne.s32.totalorder %s138, %s139
      %p151 = scmp.eq.s32.totalorder %s24, 1
      %p152 = por %p150, %p151
      %p154 = scmp.ne.s32.totalorder %s139, %s153
      %p155 = scmp.eq.s32.totalorder %s24, 0
      %p156 = por %p154, %p155
      %s158 = sadd.s32 %s157, 1
      %p161 = scmp.eq.s32.totalorder %s18, 1
      %p162 = scmp.ne.s32.totalorder %s157, %s159
      %p163 = scmp.eq.s32.totalorder %s18, 0
      %p164 = por %p162, %p163
      %p165 = scmp.ne.s32.totalorder %s157, %s159
      %p166 = scmp.eq.s32.totalorder %s23, 1
      %p167 = por %p165, %p166
      %p168 = scmp.ne.s32.totalorder %s159, %s160
      %p169 = scmp.eq.s32.totalorder %s23, 0
      %p170 = por %p168, %p169
      %p171 = scmp.ne.s32.totalorder %s159, %s160
      %p172 = scmp.eq.s32.totalorder %s24, 1
      %p173 = por %p171, %p172
      %p175 = scmp.ne.s32.totalorder %s160, %s174
      %p176 = scmp.eq.s32.totalorder %s24, 0
      %p177 = por %p175, %p176
      %s179 = sadd.s32 %s178, 1
      %p182 = scmp.eq.s32.totalorder %s18, 1
      %p183 = scmp.ne.s32.totalorder %s178, %s180
      %p184 = scmp.eq.s32.totalorder %s18, 0
      %p185 = por %p183, %p184
      %p186 = scmp.ne.s32.totalorder %s178, %s180
      %p187 = scmp.eq.s32.totalorder %s23, 1
      %p188 = por %p186, %p187
      %p189 = scmp.ne.s32.totalorder %s180, %s181
      %p190 = scmp.eq.s32.totalorder %s23, 0
      %p191 = por %p189, %p190
      %p192 = scmp.ne.s32.totalorder %s180, %s181
      %p193 = scmp.eq.s32.totalorder %s24, 1
      %p194 = por %p192, %p193
      %p196 = scmp.ne.s32.totalorder %s181, %s195
      %p197 = scmp.eq.s32.totalorder %s24, 0
      %p198 = por %p196, %p197
      %s200 = sadd.s32 %s199, 1
      %p203 = scmp.eq.s32.totalorder %s18, 1
      %p204 = scmp.ne.s32.totalorder %s199, %s201
      %p205 = scmp.eq.s32.totalorder %s18, 0
      %p206 = por %p204, %p205
      %p207 = scmp.ne.s32.totalorder %s199, %s201
      %p208 = scmp.eq.s32.totalorder %s23, 1
      %p209 = por %p207, %p208
      %p210 = scmp.ne.s32.totalorder %s201, %s202
      %p211 = scmp.eq.s32.totalorder %s23, 0
      %p212 = por %p210, %p211
      %p213 = scmp.ne.s32.totalorder %s201, %s202
      %p214 = scmp.eq.s32.totalorder %s24, 1
      %p215 = por %p213, %p214
      %p217 = scmp.ne.s32.totalorder %s202, %s216
      %p218 = scmp.eq.s32.totalorder %s24, 0
      %p219 = por %p217, %p218
      %s220 = ssub.s32 %s18, %s25
      %p221 = scmp.eq.s32.totalorder %s220, 0
      %s223 = sadd.s32 %s222, 1
      %s224 = scalar_select %p221, %s222, %s223
      %p227 = pneg %p221
      %p228 = scmp.eq.s32.totalorder %s18, 1
      %p229 = por %p227, %p228
      %p230 = scmp.ne.s32.totalorder %s222, %s225
      %p231 = scmp.eq.s32.totalorder %s18, 0
      %p232 = por %p230, %p231
      %p233 = scmp.ne.s32.totalorder %s222, %s225
      %p234 = scmp.eq.s32.totalorder %s23, 1
      %p235 = por %p233, %p234
      %p236 = scmp.ne.s32.totalorder %s225, %s226
      %p237 = scmp.eq.s32.totalorder %s23, 0
      %p238 = por %p236, %p237
      %p239 = scmp.ne.s32.totalorder %s225, %s226
      %p240 = scmp.eq.s32.totalorder %s24, 1
      %p241 = por %p239, %p240
      %p243 = scmp.ne.s32.totalorder %s226, %s242
      %p244 = scmp.eq.s32.totalorder %s24, 0
      %p245 = por %p243, %p244
      %p246 = scmp.le.s32.totalorder 1, %s18
      %p247 = scmp.lt.s32.totalorder %s18, 3
      %p248 = pnand %p246, %p247
      %p249 = pneg %p248
      // Predicated region
      $region9: #{tpu_custom_call.1} parent=5 // pred_check
        _
      $region10: #{tpu_custom_call.1} parent=5 // pred_check_branch
        %251 = sbr.rel (%p248) target = $region12
      $region11: #{tpu_custom_call.1} parent=5 // pred_region
        %s252 = ssub.s32 %s18, 1
        // Predicated region
        $region13: #{tpu_custom_call.1} parent=11 // pred_check
          %p253 = pneg %p65
        $region14: #{tpu_custom_call.1} parent=11 // pred_check_branch
          %255 = sbr.rel (%p253) target = $region16
        $region15: #{tpu_custom_call.1} parent=11 // pred_region
          _
        $region16: #{tpu_custom_call.1} parent=11 // pred_fallthru
          _
        // Predicated region
        $region17: #{tpu_custom_call.1} parent=11 // pred_check
          %p256 = pneg %p86
        $region18: #{tpu_custom_call.1} parent=11 // pred_check_branch
          %258 = sbr.rel (%p256) target = $region20
        $region19: #{tpu_custom_call.1} parent=11 // pred_region
          _
        $region20: #{tpu_custom_call.1} parent=11 // pred_fallthru
          _
        // Predicated region
        $region21: #{tpu_custom_call.1} parent=11 // pred_check
          %p259 = pneg %p107
        $region22: #{tpu_custom_call.1} parent=11 // pred_check_branch
          %261 = sbr.rel (%p259) target = $region24
        $region23: #{tpu_custom_call.1} parent=11 // pred_region
          _
        $region24: #{tpu_custom_call.1} parent=11 // pred_fallthru
          _
        // Predicated region
        $region25: #{tpu_custom_call.1} parent=11 // pred_check
          %p262 = pneg %p128
        $region26: #{tpu_custom_call.1} parent=11 // pred_check_branch
          %264 = sbr.rel (%p262) target = $region28
        $region27: #{tpu_custom_call.1} parent=11 // pred_region
          _
        $region28: #{tpu_custom_call.1} parent=11 // pred_fallthru
          _
        // Predicated region
        $region29: #{tpu_custom_call.1} parent=11 // pred_check
          %p265 = pneg %p149
        $region30: #{tpu_custom_call.1} parent=11 // pred_check_branch
          %267 = sbr.rel (%p265) target = $region32
        $region31: #{tpu_custom_call.1} parent=11 // pred_region
          _
        $region32: #{tpu_custom_call.1} parent=11 // pred_fallthru
          _
        // Predicated region
        $region33: #{tpu_custom_call.1} parent=11 // pred_check
          %p268 = pneg %p170
        $region34: #{tpu_custom_call.1} parent=11 // pred_check_branch
          %270 = sbr.rel (%p268) target = $region36
        $region35: #{tpu_custom_call.1} parent=11 // pred_region
          _
        $region36: #{tpu_custom_call.1} parent=11 // pred_fallthru
          _
        // Predicated region
        $region37: #{tpu_custom_call.1} parent=11 // pred_check
          %p271 = pneg %p191
        $region38: #{tpu_custom_call.1} parent=11 // pred_check_branch
          %273 = sbr.rel (%p271) target = $region40
        $region39: #{tpu_custom_call.1} parent=11 // pred_region
          _
        $region40: #{tpu_custom_call.1} parent=11 // pred_fallthru
          _
        // Predicated region
        $region41: #{tpu_custom_call.1} parent=11 // pred_check
          %p274 = pneg %p212
        $region42: #{tpu_custom_call.1} parent=11 // pred_check_branch
          %276 = sbr.rel (%p274) target = $region44
        $region43: #{tpu_custom_call.1} parent=11 // pred_region
          _
        $region44: #{tpu_custom_call.1} parent=11 // pred_fallthru
          _
      $region12: #{tpu_custom_call.1} parent=5 // pred_fallthru
        _
      %p277 = scmp.lt.s32.totalorder %s18, 2
      // Predicated region
      $region45: #{tpu_custom_call.1} parent=5 // pred_check
        %p278 = pneg %p277
      $region46: #{tpu_custom_call.1} parent=5 // pred_check_branch
        %280 = sbr.rel (%p278) target = $region48
      $region47: #{tpu_custom_call.1} parent=5 // pred_region
        // Predicated region
        $region49: #{tpu_custom_call.1} parent=47 // pred_check
          %p281 = pneg %p38
        $region50: #{tpu_custom_call.1} parent=47 // pred_check_branch
          %283 = sbr.rel (%p281) target = $region52
        $region51: #{tpu_custom_call.1} parent=47 // pred_region
          %s284 = smul.u32 32, %s18
          %p285 = scmp.lt.s32.totalorder %s284, 63
          %s286 = scalar_select %p285, %s284, 63
          %s287 = smul.addr %s286, 4
          %s288 = scalar_lea.vmem %s0, %s287
          %s289 = smul.u32 32, %s18
        $region52: #{tpu_custom_call.1} parent=47 // pred_fallthru
          _
      $region48: #{tpu_custom_call.1} parent=5 // pred_fallthru
        _
      %p290 = scmp.le.s32.totalorder 1, %s18
      %p291 = scmp.lt.s32.totalorder %s18, 3
      %p292 = pnand %p290, %p291
      %p293 = pneg %p292
      // Predicated region
      $region53: #{tpu_custom_call.1} parent=5 // pred_check
        _
      $region54: #{tpu_custom_call.1} parent=5 // pred_check_branch
        %295 = sbr.rel (%p292) target = $region56
      $region55: #{tpu_custom_call.1} parent=5 // pred_region
        %s296 = ssub.s32 %s18, 1
        %s297 = smul.u32 32, %s23
        %p298 = scmp.lt.s32.totalorder %s297, 63
        %s299 = scalar_select %p298, %s297, 63
        %s300 = smul.addr %s299, 4
        %s301 = scalar_lea.vmem %s0, %s300
        %p302 = pneg %p44
        %p303 = pneg %p41
        %p304 = pneg %p65
        %p305 = pneg %p62
        %p306 = pneg %p86
        %p307 = pneg %p83
        %p308 = pneg %p107
        %p309 = pneg %p104
        %p310 = pneg %p128
        %p311 = pneg %p125
        %p312 = pneg %p149
        %p313 = pneg %p146
        %p314 = pneg %p170
        %p315 = pneg %p167
        %p316 = pneg %p191
        %p317 = pneg %p188
        %p318 = pneg %p212
        %p319 = pneg %p209
        %p320 = pneg %p238
        %p321 = pneg %p235
        %s322 = sand.u32 %s225, 1
        %s323 = scalar_lea.sflag [#allocation3], %s322
        %s324 = sand.u32 %s225, 1
        %s325 = smul.addr %s324, 768
        %s326 = scalar_lea.vmem [#allocation2], %s325
        %s327 = smul.u32 32, %s23
        %p328 = scmp.lt.s32.totalorder %s327, 63
        %s329 = scalar_select %p328, %s327, 63
        %s330 = smul.addr %s329, 4
        %s331 = scalar_lea.vmem %s0, %s330
        %s332 = smul.u32 32, %s23
        %s333 = smul.u32 32, %s23
        %v335 = vld [vmem:[%s331] sm:$0xf]
        %v336 = vld [vmem:[%s331 + $0x4] sm:$0xf]
        %v337 = vld [vmem:[%s331 + $0x8] sm:$0xf]
        %v338 = vld [vmem:[%s331 + $0xc] sm:$0xf]
        %v339 = vld [vmem:[%s331 + $0x10] sm:$0xf]
        %v340 = vld [vmem:[%s331 + $0x14] sm:$0xf]
        %v341 = vld [vmem:[%s331 + $0x18] sm:$0xf]
        %v342 = vld [vmem:[%s331 + $0x1c] sm:$0xf]
        %v343 = vld [vmem:[%s331 + $0x20] sm:$0xf]
        %v344 = vld [vmem:[%s331 + $0x24] sm:$0xf]
        %v345 = vld [vmem:[%s331 + $0x28] sm:$0xf]
        %v346 = vld [vmem:[%s331 + $0x2c] sm:$0xf]
        %v347 = vld [vmem:[%s331 + $0x30] sm:$0xf]
        %v348 = vld [vmem:[%s331 + $0x34] sm:$0xf]
        %v349 = vld [vmem:[%s331 + $0x38] sm:$0xf]
        %v350 = vld [vmem:[%s331 + $0x3c] sm:$0xf]
        %v351 = vld [vmem:[%s331 + $0x40] sm:$0xf]
        %v352 = vld [vmem:[%s331 + $0x44] sm:$0xf]
        %v353 = vld [vmem:[%s331 + $0x48] sm:$0xf]
        %v354 = vld [vmem:[%s331 + $0x4c] sm:$0xf]
        %v355 = vld [vmem:[%s331 + $0x50] sm:$0xf]
        %v356 = vld [vmem:[%s331 + $0x54] sm:$0xf]
        %v357 = vld [vmem:[%s331 + $0x58] sm:$0xf]
        %v358 = vld [vmem:[%s331 + $0x5c] sm:$0xf]
        %v359 = vld [vmem:[%s331 + $0x60] sm:$0xf]
        %v360 = vld [vmem:[%s331 + $0x64] sm:$0xf]
        %v361 = vld [vmem:[%s331 + $0x68] sm:$0xf]
        %v362 = vld [vmem:[%s331 + $0x6c] sm:$0xf]
        %v363 = vld [vmem:[%s331 + $0x70] sm:$0xf]
        %v364 = vld [vmem:[%s331 + $0x74] sm:$0xf]
        %v365 = vld [vmem:[%s331 + $0x78] sm:$0xf]
        %v366 = vld [vmem:[%s331 + $0x7c] sm:$0xf]
        %v367 = vld [vmem:[%s1] sm:$0xff]
        %v368 = vld [vmem:[%s1 + $0x8] sm:$0xf]
        %v369 = vld [vmem:[%s1 + $0xc] sm:$0xff]
        %v370 = vld [vmem:[%s1 + $0x14] sm:$0xf]
        %v371 = vld [vmem:[%s1 + $0x18] sm:$0xff]
        %v372 = vld [vmem:[%s1 + $0x20] sm:$0xf]
        %v373 = vld [vmem:[%s1 + $0x24] sm:$0xff]
        %v374 = vld [vmem:[%s1 + $0x2c] sm:$0xf]
        %v375 = vld [vmem:[%s1 + $0x30] sm:$0xff]
        %v376 = vld [vmem:[%s1 + $0x38] sm:$0xf]
        %v377 = vld [vmem:[%s1 + $0x3c] sm:$0xff]
        %v378 = vld [vmem:[%s1 + $0x44] sm:$0xf]
        %v379 = vld [vmem:[%s1 + $0x48] sm:$0xff]
        %v380 = vld [vmem:[%s1 + $0x50] sm:$0xf]
        %v381 = vld [vmem:[%s1 + $0x54] sm:$0xff]
        %v382 = vld [vmem:[%s1 + $0x5c] sm:$0xf]
        %v383 = vld [vmem:[%s2] sm:$0x7]
        %v385 = vperm.slane %v383, 0
        %v386 = vperm.slane %v383, 1
        %v387 = vperm.slane %v383, 2
        %v423 = vunpack.c.l.b16 %v335
        %v424 = vunpack.c.l.b16 %v336
        %v425 = vunpack.c.l.b16 %v337
        %v426 = vunpack.c.l.b16 %v338
        %v427 = vunpack.c.l.b16 %v339
        %v428 = vunpack.c.l.b16 %v340
        %v429 = vunpack.c.l.b16 %v341
        %v430 = vunpack.c.l.b16 %v342
        %v431 = vunpack.c.l.b16 %v343
        %v432 = vunpack.c.l.b16 %v344
        %v433 = vunpack.c.l.b16 %v345
        %v434 = vunpack.c.l.b16 %v346
        %v435 = vunpack.c.l.b16 %v347
        %v436 = vunpack.c.l.b16 %v348
        %v437 = vunpack.c.l.b16 %v349
        %v438 = vunpack.c.l.b16 %v350
        %v439 = vunpack.c.l.b16 %v351
        %v440 = vunpack.c.l.b16 %v352
        %v441 = vunpack.c.l.b16 %v353
        %v442 = vunpack.c.l.b16 %v354
        %v443 = vunpack.c.l.b16 %v355
        %v444 = vunpack.c.l.b16 %v356
        %v445 = vunpack.c.l.b16 %v357
        %v446 = vunpack.c.l.b16 %v358
        %v447 = vunpack.c.l.b16 %v359
        %v448 = vunpack.c.l.b16 %v360
        %v449 = vunpack.c.l.b16 %v361
        %v450 = vunpack.c.l.b16 %v362
        %v451 = vunpack.c.l.b16 %v363
        %v452 = vunpack.c.l.b16 %v364
        %v453 = vunpack.c.l.b16 %v365
        %v454 = vunpack.c.l.b16 %v366
        %v455 = vpack.c.b16 %v424, %v423
        %v456 = vpack.c.b16 %v426, %v425
        %v457 = vpack.c.b16 %v428, %v427
        %v458 = vpack.c.b16 %v430, %v429
        %v459 = vpack.c.b16 %v432, %v431
        %v460 = vpack.c.b16 %v434, %v433
        %v461 = vpack.c.b16 %v436, %v435
        %v462 = vpack.c.b16 %v438, %v437
        %v463 = vpack.c.b16 %v440, %v439
        %v464 = vpack.c.b16 %v442, %v441
        %v465 = vpack.c.b16 %v444, %v443
        %v466 = vpack.c.b16 %v446, %v445
        %v467 = vpack.c.b16 %v448, %v447
        %v468 = vpack.c.b16 %v450, %v449
        %v469 = vpack.c.b16 %v452, %v451
        %v470 = vpack.c.b16 %v454, %v453
        %v487 = vunpack.c.l.b16 %v367
        %v488 = vunpack.c.h.b16 %v367
        %v489 = vunpack.c.l.b16 %v368
        %v490 = vunpack.c.l.b16 %v369
        %v491 = vunpack.c.h.b16 %v369
        %v492 = vunpack.c.l.b16 %v370
        %v493 = vunpack.c.l.b16 %v371
        %v494 = vunpack.c.h.b16 %v371
        %v495 = vunpack.c.l.b16 %v372
        %v496 = vunpack.c.l.b16 %v373
        %v497 = vunpack.c.h.b16 %v373
        %v498 = vunpack.c.l.b16 %v374
        %v499 = vunpack.c.l.b16 %v375
        %v500 = vunpack.c.h.b16 %v375
        %v501 = vunpack.c.l.b16 %v376
        %v502 = vunpack.c.l.b16 %v377
        %v503 = vunpack.c.h.b16 %v377
        %v504 = vunpack.c.l.b16 %v378
        %v505 = vunpack.c.l.b16 %v379
        %v506 = vunpack.c.h.b16 %v379
        %v507 = vunpack.c.l.b16 %v380
        %v508 = vunpack.c.l.b16 %v381
        %v509 = vunpack.c.h.b16 %v381
        %v510 = vunpack.c.l.b16 %v382
        %v511 = vpack.c.b16 %v490, %v487
        %v512 = vpack.c.b16 %v491, %v488
        %v513 = vpack.c.b16 %v492, %v489
        %v514 = vpack.c.b16 %v496, %v493
        %v515 = vpack.c.b16 %v497, %v494
        %v516 = vpack.c.b16 %v498, %v495
        %v517 = vpack.c.b16 %v502, %v499
        %v518 = vpack.c.b16 %v503, %v500
        %v519 = vpack.c.b16 %v504, %v501
        %v520 = vpack.c.b16 %v508, %v505
        %v521 = vpack.c.b16 %v509, %v506
        %v522 = vpack.c.b16 %v510, %v507
        %vm535 = vcmask 523264
        %v537 = vsel %vm535, %v455, 0
        %v540 = vsel %vm535, %v456, 0
        %v543 = vsel %vm535, %v457, 0
        %v546 = vsel %vm535, %v458, 0
        %v549 = vsel %vm535, %v459, 0
        %v552 = vsel %vm535, %v460, 0
        %v555 = vsel %vm535, %v461, 0
        %v558 = vsel %vm535, %v462, 0
        %v561 = vsel %vm535, %v463, 0
        %v564 = vsel %vm535, %v464, 0
        %v567 = vsel %vm535, %v465, 0
        %v570 = vsel %vm535, %v466, 0
        %v573 = vsel %vm535, %v467, 0
        %v576 = vsel %vm535, %v468, 0
        %v579 = vsel %vm535, %v469, 0
        %v582 = vsel %vm535, %v470, 0
        %584 = vmatpush.bf16.msra.mxu0 0
        %585 = vmatpush.bf16.msra.mxu0 0
        %586 = vmatpush.bf16.msra.mxu0 0
        %587 = vmatpush.bf16.msra.mxu0 0
        %588 = vmatpush.bf16.msra.mxu0 %v520
        %589 = vmatpush.bf16.msra.mxu0 %v517
        %590 = vmatpush.bf16.msra.mxu0 %v514
        %591 = vmatpush.bf16.msra.mxu0 %v511
        %592 = vmatmul.bf16.gmra.mxu0 %v537
        %v593 = vpop.f32.mrf.mxu0
        %v594 = vadd.f32 %v385, %v593
        %v595 = vpop.f32.mrf.mxu0
        %v596 = vadd.f32 %v385, %v595
        %597 = vmatmul.bf16.gmra.mxu0 %v540
        %v598 = vpop.f32.mrf.mxu0
        %v599 = vadd.f32 %v385, %v598
        %v600 = vpop.f32.mrf.mxu0
        %v601 = vadd.f32 %v385, %v600
        %602 = vmatmul.bf16.gmra.mxu0 %v543
        %v603 = vpop.f32.mrf.mxu0
        %v604 = vadd.f32 %v385, %v603
        %v605 = vpop.f32.mrf.mxu0
        %v606 = vadd.f32 %v385, %v605
        %607 = vmatmul.bf16.gmra.mxu0 %v546
        %v608 = vpop.f32.mrf.mxu0
        %v609 = vadd.f32 %v385, %v608
        %v610 = vpop.f32.mrf.mxu0
        %v611 = vadd.f32 %v385, %v610
        %612 = vmatmul.bf16.gmra.mxu0 %v549
        %v613 = vpop.f32.mrf.mxu0
        %v614 = vadd.f32 %v385, %v613
        %v615 = vpop.f32.mrf.mxu0
        %v616 = vadd.f32 %v385, %v615
        %617 = vmatmul.bf16.gmra.mxu0 %v552
        %v618 = vpop.f32.mrf.mxu0
        %v619 = vadd.f32 %v385, %v618
        %v620 = vpop.f32.mrf.mxu0
        %v621 = vadd.f32 %v385, %v620
        %622 = vmatmul.bf16.gmra.mxu0 %v555
        %v623 = vpop.f32.mrf.mxu0
        %v624 = vadd.f32 %v385, %v623
        %v625 = vpop.f32.mrf.mxu0
        %v626 = vadd.f32 %v385, %v625
        %627 = vmatmul.bf16.gmra.mxu0 %v558
        %v628 = vpop.f32.mrf.mxu0
        %v629 = vadd.f32 %v385, %v628
        %v630 = vpop.f32.mrf.mxu0
        %v631 = vadd.f32 %v385, %v630
        %632 = vmatmul.bf16.gmra.mxu0 %v561
        %v633 = vpop.f32.mrf.mxu0
        %v634 = vadd.f32 %v385, %v633
        %v635 = vpop.f32.mrf.mxu0
        %v636 = vadd.f32 %v385, %v635
        %637 = vmatmul.bf16.gmra.mxu0 %v564
        %v638 = vpop.f32.mrf.mxu0
        %v639 = vadd.f32 %v385, %v638
        %v640 = vpop.f32.mrf.mxu0
        %v641 = vadd.f32 %v385, %v640
        %642 = vmatmul.bf16.gmra.mxu0 %v567
        %v643 = vpop.f32.mrf.mxu0
        %v644 = vadd.f32 %v385, %v643
        %v645 = vpop.f32.mrf.mxu0
        %v646 = vadd.f32 %v385, %v645
        %647 = vmatmul.bf16.gmra.mxu0 %v570
        %v648 = vpop.f32.mrf.mxu0
        %v649 = vadd.f32 %v385, %v648
        %v650 = vpop.f32.mrf.mxu0
        %v651 = vadd.f32 %v385, %v650
        %652 = vmatmul.bf16.gmra.mxu0 %v573
        %v653 = vpop.f32.mrf.mxu0
        %v654 = vadd.f32 %v385, %v653
        %v655 = vpop.f32.mrf.mxu0
        %v656 = vadd.f32 %v385, %v655
        %657 = vmatmul.bf16.gmra.mxu0 %v576
        %v658 = vpop.f32.mrf.mxu0
        %v659 = vadd.f32 %v385, %v658
        %v660 = vpop.f32.mrf.mxu0
        %v661 = vadd.f32 %v385, %v660
        %662 = vmatmul.bf16.gmra.mxu0 %v579
        %v663 = vpop.f32.mrf.mxu0
        %v664 = vadd.f32 %v385, %v663
        %v665 = vpop.f32.mrf.mxu0
        %v666 = vadd.f32 %v385, %v665
        %667 = vmatmul.bf16.gmra.mxu0 %v582
        %v668 = vpop.f32.mrf.mxu0
        %v669 = vadd.f32 %v385, %v668
        %v670 = vpop.f32.mrf.mxu0
        %v671 = vadd.f32 %v385, %v670
        %672 = vdwg.mxu0
        %673 = vmatpush.bf16.msra.mxu0 0
        %674 = vmatpush.bf16.msra.mxu0 0
        %675 = vmatpush.bf16.msra.mxu0 0
        %676 = vmatpush.bf16.msra.mxu0 0
        %677 = vmatpush.bf16.msra.mxu0 %v521
        %678 = vmatpush.bf16.msra.mxu0 %v518
        %679 = vmatpush.bf16.msra.mxu0 %v515
        %680 = vmatpush.bf16.msra.mxu0 %v512
        %681 = vmatmul.bf16.gmra.mxu0 %v537
        %v682 = vpop.f32.mrf.mxu0
        %v683 = vadd.f32 %v386, %v682
        %v684 = vpop.f32.mrf.mxu0
        %v685 = vadd.f32 %v386, %v684
        %686 = vmatmul.bf16.gmra.mxu0 %v540
        %v687 = vpop.f32.mrf.mxu0
        %v688 = vadd.f32 %v386, %v687
        %v689 = vpop.f32.mrf.mxu0
        %v690 = vadd.f32 %v386, %v689
        %691 = vmatmul.bf16.gmra.mxu0 %v543
        %v692 = vpop.f32.mrf.mxu0
        %v693 = vadd.f32 %v386, %v692
        %v694 = vpop.f32.mrf.mxu0
        %v695 = vadd.f32 %v386, %v694
        %696 = vmatmul.bf16.gmra.mxu0 %v546
        %v697 = vpop.f32.mrf.mxu0
        %v698 = vadd.f32 %v386, %v697
        %v699 = vpop.f32.mrf.mxu0
        %v700 = vadd.f32 %v386, %v699
        %701 = vmatmul.bf16.gmra.mxu0 %v549
        %v702 = vpop.f32.mrf.mxu0
        %v703 = vadd.f32 %v386, %v702
        %v704 = vpop.f32.mrf.mxu0
        %v705 = vadd.f32 %v386, %v704
        %706 = vmatmul.bf16.gmra.mxu0 %v552
        %v707 = vpop.f32.mrf.mxu0
        %v708 = vadd.f32 %v386, %v707
        %v709 = vpop.f32.mrf.mxu0
        %v710 = vadd.f32 %v386, %v709
        %711 = vmatmul.bf16.gmra.mxu0 %v555
        %v712 = vpop.f32.mrf.mxu0
        %v713 = vadd.f32 %v386, %v712
        %v714 = vpop.f32.mrf.mxu0
        %v715 = vadd.f32 %v386, %v714
        %716 = vmatmul.bf16.gmra.mxu0 %v558
        %v717 = vpop.f32.mrf.mxu0
        %v718 = vadd.f32 %v386, %v717
        %v719 = vpop.f32.mrf.mxu0
        %v720 = vadd.f32 %v386, %v719
        %721 = vmatmul.bf16.gmra.mxu0 %v561
        %v722 = vpop.f32.mrf.mxu0
        %v723 = vadd.f32 %v386, %v722
        %v724 = vpop.f32.mrf.mxu0
        %v725 = vadd.f32 %v386, %v724
        %726 = vmatmul.bf16.gmra.mxu0 %v564
        %v727 = vpop.f32.mrf.mxu0
        %v728 = vadd.f32 %v386, %v727
        %v729 = vpop.f32.mrf.mxu0
        %v730 = vadd.f32 %v386, %v729
        %731 = vmatmul.bf16.gmra.mxu0 %v567
        %v732 = vpop.f32.mrf.mxu0
        %v733 = vadd.f32 %v386, %v732
        %v734 = vpop.f32.mrf.mxu0
        %v735 = vadd.f32 %v386, %v734
        %736 = vmatmul.bf16.gmra.mxu0 %v570
        %v737 = vpop.f32.mrf.mxu0
        %v738 = vadd.f32 %v386, %v737
        %v739 = vpop.f32.mrf.mxu0
        %v740 = vadd.f32 %v386, %v739
        %741 = vmatmul.bf16.gmra.mxu0 %v573
        %v742 = vpop.f32.mrf.mxu0
        %v743 = vadd.f32 %v386, %v742
        %v744 = vpop.f32.mrf.mxu0
        %v745 = vadd.f32 %v386, %v744
        %746 = vmatmul.bf16.gmra.mxu0 %v576
        %v747 = vpop.f32.mrf.mxu0
        %v748 = vadd.f32 %v386, %v747
        %v749 = vpop.f32.mrf.mxu0
        %v750 = vadd.f32 %v386, %v749
        %751 = vmatmul.bf16.gmra.mxu0 %v579
        %v752 = vpop.f32.mrf.mxu0
        %v753 = vadd.f32 %v386, %v752
        %v754 = vpop.f32.mrf.mxu0
        %v755 = vadd.f32 %v386, %v754
        %756 = vmatmul.bf16.gmra.mxu0 %v582
        %v757 = vpop.f32.mrf.mxu0
        %v758 = vadd.f32 %v386, %v757
        %v759 = vpop.f32.mrf.mxu0
        %v760 = vadd.f32 %v386, %v759
        %761 = vdwg.mxu0
        %762 = vmatpush.bf16.msra.mxu0 0
        %763 = vmatpush.bf16.msra.mxu0 0
        %764 = vmatpush.bf16.msra.mxu0 0
        %765 = vmatpush.bf16.msra.mxu0 0
        %766 = vmatpush.bf16.msra.mxu0 %v522
        %767 = vmatpush.bf16.msra.mxu0 %v519
        %768 = vmatpush.bf16.msra.mxu0 %v516
        %769 = vmatpush.bf16.msra.mxu0 %v513
        %770 = vmatmul.bf16.gmra.mxu0 %v537
        %v771 = vpop.f32.mrf.mxu0
        %v772 = vadd.f32 %v387, %v771
        %v773 = vpop.f32.mrf.mxu0
        %v774 = vadd.f32 %v387, %v773
        %775 = vmatmul.bf16.gmra.mxu0 %v540
        %v776 = vpop.f32.mrf.mxu0
        %v777 = vadd.f32 %v387, %v776
        %v778 = vpop.f32.mrf.mxu0
        %v779 = vadd.f32 %v387, %v778
        %780 = vmatmul.bf16.gmra.mxu0 %v543
        %v781 = vpop.f32.mrf.mxu0
        %v782 = vadd.f32 %v387, %v781
        %v783 = vpop.f32.mrf.mxu0
        %v784 = vadd.f32 %v387, %v783
        %785 = vmatmul.bf16.gmra.mxu0 %v546
        %v786 = vpop.f32.mrf.mxu0
        %v787 = vadd.f32 %v387, %v786
        %v788 = vpop.f32.mrf.mxu0
        %v789 = vadd.f32 %v387, %v788
        %790 = vmatmul.bf16.gmra.mxu0 %v549
        %v791 = vpop.f32.mrf.mxu0
        %v792 = vadd.f32 %v387, %v791
        %v793 = vpop.f32.mrf.mxu0
        %v794 = vadd.f32 %v387, %v793
        %795 = vmatmul.bf16.gmra.mxu0 %v552
        %v796 = vpop.f32.mrf.mxu0
        %v797 = vadd.f32 %v387, %v796
        %v798 = vpop.f32.mrf.mxu0
        %v799 = vadd.f32 %v387, %v798
        %800 = vmatmul.bf16.gmra.mxu0 %v555
        %v801 = vpop.f32.mrf.mxu0
        %v802 = vadd.f32 %v387, %v801
        %v803 = vpop.f32.mrf.mxu0
        %v804 = vadd.f32 %v387, %v803
        %805 = vmatmul.bf16.gmra.mxu0 %v558
        %v806 = vpop.f32.mrf.mxu0
        %v807 = vadd.f32 %v387, %v806
        %v808 = vpop.f32.mrf.mxu0
        %v809 = vadd.f32 %v387, %v808
        %810 = vmatmul.bf16.gmra.mxu0 %v561
        %v811 = vpop.f32.mrf.mxu0
        %v812 = vadd.f32 %v387, %v811
        %v813 = vpop.f32.mrf.mxu0
        %v814 = vadd.f32 %v387, %v813
        %815 = vmatmul.bf16.gmra.mxu0 %v564
        %v816 = vpop.f32.mrf.mxu0
        %v817 = vadd.f32 %v387, %v816
        %v818 = vpop.f32.mrf.mxu0
        %v819 = vadd.f32 %v387, %v818
        %820 = vmatmul.bf16.gmra.mxu0 %v567
        %v821 = vpop.f32.mrf.mxu0
        %v822 = vadd.f32 %v387, %v821
        %v823 = vpop.f32.mrf.mxu0
        %v824 = vadd.f32 %v387, %v823
        %825 = vmatmul.bf16.gmra.mxu0 %v570
        %v826 = vpop.f32.mrf.mxu0
        %v827 = vadd.f32 %v387, %v826
        %v828 = vpop.f32.mrf.mxu0
        %v829 = vadd.f32 %v387, %v828
        %830 = vmatmul.bf16.gmra.mxu0 %v573
        %v831 = vpop.f32.mrf.mxu0
        %v832 = vadd.f32 %v387, %v831
        %v833 = vpop.f32.mrf.mxu0
        %v834 = vadd.f32 %v387, %v833
        %835 = vmatmul.bf16.gmra.mxu0 %v576
        %v836 = vpop.f32.mrf.mxu0
        %v837 = vadd.f32 %v387, %v836
        %v838 = vpop.f32.mrf.mxu0
        %v839 = vadd.f32 %v387, %v838
        %840 = vmatmul.bf16.gmra.mxu0 %v579
        %v841 = vpop.f32.mrf.mxu0
        %v842 = vadd.f32 %v387, %v841
        %v843 = vpop.f32.mrf.mxu0
        %v844 = vadd.f32 %v387, %v843
        %845 = vmatmul.bf16.gmra.mxu0 %v582
        %v846 = vpop.f32.mrf.mxu0
        %v847 = vadd.f32 %v387, %v846
        %v848 = vpop.f32.mrf.mxu0
        %v849 = vadd.f32 %v387, %v848
        %850 = vdwg.mxu0
        %v851 = vmul.f32 %v594, 0.1
        %v852 = vmul.f32 %v683, 0.1
        %v853 = vmul.f32 %v772, 0.1
        %v854 = vmul.f32 %v596, 0.1
        %v855 = vmul.f32 %v685, 0.1
        %v856 = vmul.f32 %v774, 0.1
        %v857 = vmul.f32 %v599, 0.1
        %v858 = vmul.f32 %v688, 0.1
        %v859 = vmul.f32 %v777, 0.1
        %v860 = vmul.f32 %v601, 0.1
        %v861 = vmul.f32 %v690, 0.1
        %v862 = vmul.f32 %v779, 0.1
        %v863 = vmul.f32 %v604, 0.1
        %v864 = vmul.f32 %v693, 0.1
        %v865 = vmul.f32 %v782, 0.1
        %v866 = vmul.f32 %v606, 0.1
        %v867 = vmul.f32 %v695, 0.1
        %v868 = vmul.f32 %v784, 0.1
        %v869 = vmul.f32 %v609, 0.1
        %v870 = vmul.f32 %v698, 0.1
        %v871 = vmul.f32 %v787, 0.1
        %v872 = vmul.f32 %v611, 0.1
        %v873 = vmul.f32 %v700, 0.1
        %v874 = vmul.f32 %v789, 0.1
        %v875 = vmul.f32 %v614, 0.1
        %v876 = vmul.f32 %v703, 0.1
        %v877 = vmul.f32 %v792, 0.1
        %v878 = vmul.f32 %v616, 0.1
        %v879 = vmul.f32 %v705, 0.1
        %v880 = vmul.f32 %v794, 0.1
        %v881 = vmul.f32 %v619, 0.1
        %v882 = vmul.f32 %v708, 0.1
        %v883 = vmul.f32 %v797, 0.1
        %v884 = vmul.f32 %v621, 0.1
        %v885 = vmul.f32 %v710, 0.1
        %v886 = vmul.f32 %v799, 0.1
        %v887 = vmul.f32 %v624, 0.1
        %v888 = vmul.f32 %v713, 0.1
        %v889 = vmul.f32 %v802, 0.1
        %v890 = vmul.f32 %v626, 0.1
        %v891 = vmul.f32 %v715, 0.1
        %v892 = vmul.f32 %v804, 0.1
        %v893 = vmul.f32 %v629, 0.1
        %v894 = vmul.f32 %v718, 0.1
        %v895 = vmul.f32 %v807, 0.1
        %v896 = vmul.f32 %v631, 0.1
        %v897 = vmul.f32 %v720, 0.1
        %v898 = vmul.f32 %v809, 0.1
        %v899 = vmul.f32 %v634, 0.1
        %v900 = vmul.f32 %v723, 0.1
        %v901 = vmul.f32 %v812, 0.1
        %v902 = vmul.f32 %v636, 0.1
        %v903 = vmul.f32 %v725, 0.1
        %v904 = vmul.f32 %v814, 0.1
        %v905 = vmul.f32 %v639, 0.1
        %v906 = vmul.f32 %v728, 0.1
        %v907 = vmul.f32 %v817, 0.1
        %v908 = vmul.f32 %v641, 0.1
        %v909 = vmul.f32 %v730, 0.1
        %v910 = vmul.f32 %v819, 0.1
        %v911 = vmul.f32 %v644, 0.1
        %v912 = vmul.f32 %v733, 0.1
        %v913 = vmul.f32 %v822, 0.1
        %v914 = vmul.f32 %v646, 0.1
        %v915 = vmul.f32 %v735, 0.1
        %v916 = vmul.f32 %v824, 0.1
        %v917 = vmul.f32 %v649, 0.1
        %v918 = vmul.f32 %v738, 0.1
        %v919 = vmul.f32 %v827, 0.1
        %v920 = vmul.f32 %v651, 0.1
        %v921 = vmul.f32 %v740, 0.1
        %v922 = vmul.f32 %v829, 0.1
        %v923 = vmul.f32 %v654, 0.1
        %v924 = vmul.f32 %v743, 0.1
        %v925 = vmul.f32 %v832, 0.1
        %v926 = vmul.f32 %v656, 0.1
        %v927 = vmul.f32 %v745, 0.1
        %v928 = vmul.f32 %v834, 0.1
        %v929 = vmul.f32 %v659, 0.1
        %v930 = vmul.f32 %v748, 0.1
        %v931 = vmul.f32 %v837, 0.1
        %v932 = vmul.f32 %v661, 0.1
        %v933 = vmul.f32 %v750, 0.1
        %v934 = vmul.f32 %v839, 0.1
        %v935 = vmul.f32 %v664, 0.1
        %v936 = vmul.f32 %v753, 0.1
        %v937 = vmul.f32 %v842, 0.1
        %v938 = vmul.f32 %v666, 0.1
        %v939 = vmul.f32 %v755, 0.1
        %v940 = vmul.f32 %v844, 0.1
        %v941 = vmul.f32 %v669, 0.1
        %v942 = vmul.f32 %v758, 0.1
        %v943 = vmul.f32 %v847, 0.1
        %v944 = vmul.f32 %v671, 0.1
        %v945 = vmul.f32 %v760, 0.1
        %v946 = vmul.f32 %v849, 0.1
        %v947 = vmax.f32 %v594, %v851
        %v948 = vmax.f32 %v683, %v852
        %v949 = vmax.f32 %v772, %v853
        %v950 = vmax.f32 %v596, %v854
        %v951 = vmax.f32 %v685, %v855
        %v952 = vmax.f32 %v774, %v856
        %v953 = vmax.f32 %v599, %v857
        %v954 = vmax.f32 %v688, %v858
        %v955 = vmax.f32 %v777, %v859
        %v956 = vmax.f32 %v601, %v860
        %v957 = vmax.f32 %v690, %v861
        %v958 = vmax.f32 %v779, %v862
        %v959 = vmax.f32 %v604, %v863
        %v960 = vmax.f32 %v693, %v864
        %v961 = vmax.f32 %v782, %v865
        %v962 = vmax.f32 %v606, %v866
        %v963 = vmax.f32 %v695, %v867
        %v964 = vmax.f32 %v784, %v868
        %v965 = vmax.f32 %v609, %v869
        %v966 = vmax.f32 %v698, %v870
        %v967 = vmax.f32 %v787, %v871
        %v968 = vmax.f32 %v611, %v872
        %v969 = vmax.f32 %v700, %v873
        %v970 = vmax.f32 %v789, %v874
        %v971 = vmax.f32 %v614, %v875
        %v972 = vmax.f32 %v703, %v876
        %v973 = vmax.f32 %v792, %v877
        %v974 = vmax.f32 %v616, %v878
        %v975 = vmax.f32 %v705, %v879
        %v976 = vmax.f32 %v794, %v880
        %v977 = vmax.f32 %v619, %v881
        %v978 = vmax.f32 %v708, %v882
        %v979 = vmax.f32 %v797, %v883
        %v980 = vmax.f32 %v621, %v884
        %v981 = vmax.f32 %v710, %v885
        %v982 = vmax.f32 %v799, %v886
        %v983 = vmax.f32 %v624, %v887
        %v984 = vmax.f32 %v713, %v888
        %v985 = vmax.f32 %v802, %v889
        %v986 = vmax.f32 %v626, %v890
        %v987 = vmax.f32 %v715, %v891
        %v988 = vmax.f32 %v804, %v892
        %v989 = vmax.f32 %v629, %v893
        %v990 = vmax.f32 %v718, %v894
        %v991 = vmax.f32 %v807, %v895
        %v992 = vmax.f32 %v631, %v896
        %v993 = vmax.f32 %v720, %v897
        %v994 = vmax.f32 %v809, %v898
        %v995 = vmax.f32 %v634, %v899
        %v996 = vmax.f32 %v723, %v900
        %v997 = vmax.f32 %v812, %v901
        %v998 = vmax.f32 %v636, %v902
        %v999 = vmax.f32 %v725, %v903
        %v1000 = vmax.f32 %v814, %v904
        %v1001 = vmax.f32 %v639, %v905
        %v1002 = vmax.f32 %v728, %v906
        %v1003 = vmax.f32 %v817, %v907
        %v1004 = vmax.f32 %v641, %v908
        %v1005 = vmax.f32 %v730, %v909
        %v1006 = vmax.f32 %v819, %v910
        %v1007 = vmax.f32 %v644, %v911
        %v1008 = vmax.f32 %v733, %v912
        %v1009 = vmax.f32 %v822, %v913
        %v1010 = vmax.f32 %v646, %v914
        %v1011 = vmax.f32 %v735, %v915
        %v1012 = vmax.f32 %v824, %v916
        %v1013 = vmax.f32 %v649, %v917
        %v1014 = vmax.f32 %v738, %v918
        %v1015 = vmax.f32 %v827, %v919
        %v1016 = vmax.f32 %v651, %v920
        %v1017 = vmax.f32 %v740, %v921
        %v1018 = vmax.f32 %v829, %v922
        %v1019 = vmax.f32 %v654, %v923
        %v1020 = vmax.f32 %v743, %v924
        %v1021 = vmax.f32 %v832, %v925
        %v1022 = vmax.f32 %v656, %v926
        %v1023 = vmax.f32 %v745, %v927
        %v1024 = vmax.f32 %v834, %v928
        %v1025 = vmax.f32 %v659, %v929
        %v1026 = vmax.f32 %v748, %v930
        %v1027 = vmax.f32 %v837, %v931
        %v1028 = vmax.f32 %v661, %v932
        %v1029 = vmax.f32 %v750, %v933
        %v1030 = vmax.f32 %v839, %v934
        %v1031 = vmax.f32 %v664, %v935
        %v1032 = vmax.f32 %v753, %v936
        %v1033 = vmax.f32 %v842, %v937
        %v1034 = vmax.f32 %v666, %v938
        %v1035 = vmax.f32 %v755, %v939
        %v1036 = vmax.f32 %v844, %v940
        %v1037 = vmax.f32 %v669, %v941
        %v1038 = vmax.f32 %v758, %v942
        %v1039 = vmax.f32 %v847, %v943
        %v1040 = vmax.f32 %v671, %v944
        %v1041 = vmax.f32 %v760, %v945
        %v1042 = vmax.f32 %v849, %v946
        %v1043 = vpack.c.bf16 %v948, %v947
        %v1044 = vpack.c.bf16 %v949, %v949
        %v1045 = vpack.c.bf16 %v951, %v950
        %v1046 = vpack.c.bf16 %v952, %v952
        %v1047 = vpack.c.bf16 %v954, %v953
        %v1048 = vpack.c.bf16 %v955, %v955
        %v1049 = vpack.c.bf16 %v957, %v956
        %v1050 = vpack.c.bf16 %v958, %v958
        %v1051 = vpack.c.bf16 %v960, %v959
        %v1052 = vpack.c.bf16 %v961, %v961
        %v1053 = vpack.c.bf16 %v963, %v962
        %v1054 = vpack.c.bf16 %v964, %v964
        %v1055 = vpack.c.bf16 %v966, %v965
        %v1056 = vpack.c.bf16 %v967, %v967
        %v1057 = vpack.c.bf16 %v969, %v968
        %v1058 = vpack.c.bf16 %v970, %v970
        %v1059 = vpack.c.bf16 %v972, %v971
        %v1060 = vpack.c.bf16 %v973, %v973
        %v1061 = vpack.c.bf16 %v975, %v974
        %v1062 = vpack.c.bf16 %v976, %v976
        %v1063 = vpack.c.bf16 %v978, %v977
        %v1064 = vpack.c.bf16 %v979, %v979
        %v1065 = vpack.c.bf16 %v981, %v980
        %v1066 = vpack.c.bf16 %v982, %v982
        %v1067 = vpack.c.bf16 %v984, %v983
        %v1068 = vpack.c.bf16 %v985, %v985
        %v1069 = vpack.c.bf16 %v987, %v986
        %v1070 = vpack.c.bf16 %v988, %v988
        %v1071 = vpack.c.bf16 %v990, %v989
        %v1072 = vpack.c.bf16 %v991, %v991
        %v1073 = vpack.c.bf16 %v993, %v992
        %v1074 = vpack.c.bf16 %v994, %v994
        %v1075 = vpack.c.bf16 %v996, %v995
        %v1076 = vpack.c.bf16 %v997, %v997
        %v1077 = vpack.c.bf16 %v999, %v998
        %v1078 = vpack.c.bf16 %v1000, %v1000
        %v1079 = vpack.c.bf16 %v1002, %v1001
        %v1080 = vpack.c.bf16 %v1003, %v1003
        %v1081 = vpack.c.bf16 %v1005, %v1004
        %v1082 = vpack.c.bf16 %v1006, %v1006
        %v1083 = vpack.c.bf16 %v1008, %v1007
        %v1084 = vpack.c.bf16 %v1009, %v1009
        %v1085 = vpack.c.bf16 %v1011, %v1010
        %v1086 = vpack.c.bf16 %v1012, %v1012
        %v1087 = vpack.c.bf16 %v1014, %v1013
        %v1088 = vpack.c.bf16 %v1015, %v1015
        %v1089 = vpack.c.bf16 %v1017, %v1016
        %v1090 = vpack.c.bf16 %v1018, %v1018
        %v1091 = vpack.c.bf16 %v1020, %v1019
        %v1092 = vpack.c.bf16 %v1021, %v1021
        %v1093 = vpack.c.bf16 %v1023, %v1022
        %v1094 = vpack.c.bf16 %v1024, %v1024
        %v1095 = vpack.c.bf16 %v1026, %v1025
        %v1096 = vpack.c.bf16 %v1027, %v1027
        %v1097 = vpack.c.bf16 %v1029, %v1028
        %v1098 = vpack.c.bf16 %v1030, %v1030
        %v1099 = vpack.c.bf16 %v1032, %v1031
        %v1100 = vpack.c.bf16 %v1033, %v1033
        %v1101 = vpack.c.bf16 %v1035, %v1034
        %v1102 = vpack.c.bf16 %v1036, %v1036
        %v1103 = vpack.c.bf16 %v1038, %v1037
        %v1104 = vpack.c.bf16 %v1039, %v1039
        %v1105 = vpack.c.bf16 %v1041, %v1040
        %v1106 = vpack.c.bf16 %v1042, %v1042
        %v1107 = vld [vmem:[%s3] sm:$0xf]
        %v1108 = vld [vmem:[%s3 + $0x4] sm:$0xf]
        %v1109 = vld [vmem:[%s3 + $0x8] sm:$0xf]
        %v1110 = vld [vmem:[%s3 + $0xc] sm:$0xf]
        %v1111 = vld [vmem:[%s3 + $0x10] sm:$0xf]
        %v1112 = vld [vmem:[%s3 + $0x14] sm:$0xf]
        %v1113 = vld [vmem:[%s3 + $0x18] sm:$0xf]
        %v1114 = vld [vmem:[%s3 + $0x1c] sm:$0xf]
        %v1115 = vld [vmem:[%s3 + $0x20] sm:$0xf]
        %v1116 = vld [vmem:[%s3 + $0x24] sm:$0xf]
        %v1117 = vld [vmem:[%s3 + $0x28] sm:$0xf]
        %v1118 = vld [vmem:[%s3 + $0x2c] sm:$0xf]
        %v1119 = vld [vmem:[%s3 + $0x30] sm:$0xf]
        %v1120 = vld [vmem:[%s3 + $0x34] sm:$0xf]
        %v1121 = vld [vmem:[%s3 + $0x38] sm:$0xf]
        %v1122 = vld [vmem:[%s3 + $0x3c] sm:$0xf]
        %v1123 = vld [vmem:[%s4] sm:$0x1]
        %v1125 = vperm.slane %v1123, 0
        %v1159 = vunpack.c.l.b16 %v1043
        %v1160 = vunpack.c.l.b16 %v1045
        %v1161 = vunpack.c.l.b16 %v1047
        %v1162 = vunpack.c.l.b16 %v1049
        %v1163 = vunpack.c.l.b16 %v1051
        %v1164 = vunpack.c.l.b16 %v1053
        %v1165 = vunpack.c.l.b16 %v1055
        %v1166 = vunpack.c.l.b16 %v1057
        %v1167 = vunpack.c.l.b16 %v1059
        %v1168 = vunpack.c.l.b16 %v1061
        %v1169 = vunpack.c.l.b16 %v1063
        %v1170 = vunpack.c.l.b16 %v1065
        %v1171 = vunpack.c.l.b16 %v1067
        %v1172 = vunpack.c.l.b16 %v1069
        %v1173 = vunpack.c.l.b16 %v1071
        %v1174 = vunpack.c.l.b16 %v1073
        %v1175 = vunpack.c.l.b16 %v1075
        %v1176 = vunpack.c.l.b16 %v1077
        %v1177 = vunpack.c.l.b16 %v1079
        %v1178 = vunpack.c.l.b16 %v1081
        %v1179 = vunpack.c.l.b16 %v1083
        %v1180 = vunpack.c.l.b16 %v1085
        %v1181 = vunpack.c.l.b16 %v1087
        %v1182 = vunpack.c.l.b16 %v1089
        %v1183 = vunpack.c.l.b16 %v1091
        %v1184 = vunpack.c.l.b16 %v1093
        %v1185 = vunpack.c.l.b16 %v1095
        %v1186 = vunpack.c.l.b16 %v1097
        %v1187 = vunpack.c.l.b16 %v1099
        %v1188 = vunpack.c.l.b16 %v1101
        %v1189 = vunpack.c.l.b16 %v1103
        %v1190 = vunpack.c.l.b16 %v1105
        %v1191 = vpack.c.b16 %v1160, %v1159
        %v1192 = vpack.c.b16 %v1162, %v1161
        %v1193 = vpack.c.b16 %v1164, %v1163
        %v1194 = vpack.c.b16 %v1166, %v1165
        %v1195 = vpack.c.b16 %v1168, %v1167
        %v1196 = vpack.c.b16 %v1170, %v1169
        %v1197 = vpack.c.b16 %v1172, %v1171
        %v1198 = vpack.c.b16 %v1174, %v1173
        %v1199 = vpack.c.b16 %v1176, %v1175
        %v1200 = vpack.c.b16 %v1178, %v1177
        %v1201 = vpack.c.b16 %v1180, %v1179
        %v1202 = vpack.c.b16 %v1182, %v1181
        %v1203 = vpack.c.b16 %v1184, %v1183
        %v1204 = vpack.c.b16 %v1186, %v1185
        %v1205 = vpack.c.b16 %v1188, %v1187
        %v1206 = vpack.c.b16 %v1190, %v1189
        %v1239 = vunpack.c.l.b16 %v1107
        %v1240 = vunpack.c.l.b16 %v1108
        %v1241 = vunpack.c.l.b16 %v1109
        %v1242 = vunpack.c.l.b16 %v1110
        %v1243 = vunpack.c.l.b16 %v1111
        %v1244 = vunpack.c.l.b16 %v1112
        %v1245 = vunpack.c.l.b16 %v1113
        %v1246 = vunpack.c.l.b16 %v1114
        %v1247 = vunpack.c.l.b16 %v1115
        %v1248 = vunpack.c.l.b16 %v1116
        %v1249 = vunpack.c.l.b16 %v1117
        %v1250 = vunpack.c.l.b16 %v1118
        %v1251 = vunpack.c.l.b16 %v1119
        %v1252 = vunpack.c.l.b16 %v1120
        %v1253 = vunpack.c.l.b16 %v1121
        %v1254 = vunpack.c.l.b16 %v1122
        %v1255 = vpack.c.b16 %v1240, %v1239
        %v1256 = vpack.c.b16 %v1242, %v1241
        %v1257 = vpack.c.b16 %v1244, %v1243
        %v1258 = vpack.c.b16 %v1246, %v1245
        %v1259 = vpack.c.b16 %v1248, %v1247
        %v1260 = vpack.c.b16 %v1250, %v1249
        %v1261 = vpack.c.b16 %v1252, %v1251
        %v1262 = vpack.c.b16 %v1254, %v1253
        %1271 = vmatpush.bf16.msra.mxu0 %v1262
        %1272 = vmatpush.bf16.msra.mxu0 %v1261
        %1273 = vmatpush.bf16.msra.mxu0 %v1260
        %1274 = vmatpush.bf16.msra.mxu0 %v1259
        %1275 = vmatpush.bf16.msra.mxu0 %v1258
        %1276 = vmatpush.bf16.msra.mxu0 %v1257
        %1277 = vmatpush.bf16.msra.mxu0 %v1256
        %1278 = vmatpush.bf16.msra.mxu0 %v1255
        %1279 = vmatmul.bf16.gmra.mxu0 %v1191
        %v1280 = vpop.f32.mrf.mxu0
        %v1281 = vadd.f32 %v1125, %v1280
        %v1282 = vpop.f32.mrf.mxu0
        %v1283 = vadd.f32 %v1125, %v1282
        %1284 = vmatmul.bf16.gmra.mxu0 %v1192
        %v1285 = vpop.f32.mrf.mxu0
        %v1286 = vadd.f32 %v1125, %v1285
        %v1287 = vpop.f32.mrf.mxu0
        %v1288 = vadd.f32 %v1125, %v1287
        %1289 = vmatmul.bf16.gmra.mxu0 %v1193
        %v1290 = vpop.f32.mrf.mxu0
        %v1291 = vadd.f32 %v1125, %v1290
        %v1292 = vpop.f32.mrf.mxu0
        %v1293 = vadd.f32 %v1125, %v1292
        %1294 = vmatmul.bf16.gmra.mxu0 %v1194
        %v1295 = vpop.f32.mrf.mxu0
        %v1296 = vadd.f32 %v1125, %v1295
        %v1297 = vpop.f32.mrf.mxu0
        %v1298 = vadd.f32 %v1125, %v1297
        %1299 = vmatmul.bf16.gmra.mxu0 %v1195
        %v1300 = vpop.f32.mrf.mxu0
        %v1301 = vadd.f32 %v1125, %v1300
        %v1302 = vpop.f32.mrf.mxu0
        %v1303 = vadd.f32 %v1125, %v1302
        %1304 = vmatmul.bf16.gmra.mxu0 %v1196
        %v1305 = vpop.f32.mrf.mxu0
        %v1306 = vadd.f32 %v1125, %v1305
        %v1307 = vpop.f32.mrf.mxu0
        %v1308 = vadd.f32 %v1125, %v1307
        %1309 = vmatmul.bf16.gmra.mxu0 %v1197
        %v1310 = vpop.f32.mrf.mxu0
        %v1311 = vadd.f32 %v1125, %v1310
        %v1312 = vpop.f32.mrf.mxu0
        %v1313 = vadd.f32 %v1125, %v1312
        %1314 = vmatmul.bf16.gmra.mxu0 %v1198
        %v1315 = vpop.f32.mrf.mxu0
        %v1316 = vadd.f32 %v1125, %v1315
        %v1317 = vpop.f32.mrf.mxu0
        %v1318 = vadd.f32 %v1125, %v1317
        %1319 = vmatmul.bf16.gmra.mxu0 %v1199
        %v1320 = vpop.f32.mrf.mxu0
        %v1321 = vadd.f32 %v1125, %v1320
        %v1322 = vpop.f32.mrf.mxu0
        %v1323 = vadd.f32 %v1125, %v1322
        %1324 = vmatmul.bf16.gmra.mxu0 %v1200
        %v1325 = vpop.f32.mrf.mxu0
        %v1326 = vadd.f32 %v1125, %v1325
        %v1327 = vpop.f32.mrf.mxu0
        %v1328 = vadd.f32 %v1125, %v1327
        %1329 = vmatmul.bf16.gmra.mxu0 %v1201
        %v1330 = vpop.f32.mrf.mxu0
        %v1331 = vadd.f32 %v1125, %v1330
        %v1332 = vpop.f32.mrf.mxu0
        %v1333 = vadd.f32 %v1125, %v1332
        %1334 = vmatmul.bf16.gmra.mxu0 %v1202
        %v1335 = vpop.f32.mrf.mxu0
        %v1336 = vadd.f32 %v1125, %v1335
        %v1337 = vpop.f32.mrf.mxu0
        %v1338 = vadd.f32 %v1125, %v1337
        %1339 = vmatmul.bf16.gmra.mxu0 %v1203
        %v1340 = vpop.f32.mrf.mxu0
        %v1341 = vadd.f32 %v1125, %v1340
        %v1342 = vpop.f32.mrf.mxu0
        %v1343 = vadd.f32 %v1125, %v1342
        %1344 = vmatmul.bf16.gmra.mxu0 %v1204
        %v1345 = vpop.f32.mrf.mxu0
        %v1346 = vadd.f32 %v1125, %v1345
        %v1347 = vpop.f32.mrf.mxu0
        %v1348 = vadd.f32 %v1125, %v1347
        %1349 = vmatmul.bf16.gmra.mxu0 %v1205
        %v1350 = vpop.f32.mrf.mxu0
        %v1351 = vadd.f32 %v1125, %v1350
        %v1352 = vpop.f32.mrf.mxu0
        %v1353 = vadd.f32 %v1125, %v1352
        %1354 = vmatmul.bf16.gmra.mxu0 %v1206
        %v1355 = vpop.f32.mrf.mxu0
        %v1356 = vadd.f32 %v1125, %v1355
        %v1357 = vpop.f32.mrf.mxu0
        %v1358 = vadd.f32 %v1125, %v1357
        %1359 = vdwg.mxu0
        %1360 = vst [vmem:[%s326] sm:$0xff] %v1281
        %1361 = vst [vmem:[%s326 + $0x18] sm:$0xff] %v1283
        %1362 = vst [vmem:[%s326 + $0x30] sm:$0xff] %v1286
        %1363 = vst [vmem:[%s326 + $0x48] sm:$0xff] %v1288
        %1364 = vst [vmem:[%s326 + $0x60] sm:$0xff] %v1291
        %1365 = vst [vmem:[%s326 + $0x78] sm:$0xff] %v1293
        %1366 = vst [vmem:[%s326 + $0x90] sm:$0xff] %v1296
        %1367 = vst [vmem:[%s326 + $0xa8] sm:$0xff] %v1298
        %1368 = vst [vmem:[%s326 + $0xc0] sm:$0xff] %v1301
        %1369 = vst [vmem:[%s326 + $0xd8] sm:$0xff] %v1303
        %1370 = vst [vmem:[%s326 + $0xf0] sm:$0xff] %v1306
        %1371 = vst [vmem:[%s326 + $0x108] sm:$0xff] %v1308
        %1372 = vst [vmem:[%s326 + $0x120] sm:$0xff] %v1311
        %1373 = vst [vmem:[%s326 + $0x138] sm:$0xff] %v1313
        %1374 = vst [vmem:[%s326 + $0x150] sm:$0xff] %v1316
        %1375 = vst [vmem:[%s326 + $0x168] sm:$0xff] %v1318
        %1376 = vst [vmem:[%s326 + $0x180] sm:$0xff] %v1321
        %1377 = vst [vmem:[%s326 + $0x198] sm:$0xff] %v1323
        %1378 = vst [vmem:[%s326 + $0x1b0] sm:$0xff] %v1326
        %1379 = vst [vmem:[%s326 + $0x1c8] sm:$0xff] %v1328
        %1380 = vst [vmem:[%s326 + $0x1e0] sm:$0xff] %v1331
        %1381 = vst [vmem:[%s326 + $0x1f8] sm:$0xff] %v1333
        %1382 = vst [vmem:[%s326 + $0x210] sm:$0xff] %v1336
        %1383 = vst [vmem:[%s326 + $0x228] sm:$0xff] %v1338
        %1384 = vst [vmem:[%s326 + $0x240] sm:$0xff] %v1341
        %1385 = vst [vmem:[%s326 + $0x258] sm:$0xff] %v1343
        %1386 = vst [vmem:[%s326 + $0x270] sm:$0xff] %v1346
        %1387 = vst [vmem:[%s326 + $0x288] sm:$0xff] %v1348
        %1388 = vst [vmem:[%s326 + $0x2a0] sm:$0xff] %v1351
        %1389 = vst [vmem:[%s326 + $0x2b8] sm:$0xff] %v1353
        %1390 = vst [vmem:[%s326 + $0x2d0] sm:$0xff] %v1356
        %1391 = vst [vmem:[%s326 + $0x2e8] sm:$0xff] %v1358
        %v1392 = vld [vmem:[%s5] sm:$0xf]
        %v1393 = vld [vmem:[%s5 + $0x4] sm:$0xf]
        %v1394 = vld [vmem:[%s5 + $0x8] sm:$0xf]
        %v1395 = vld [vmem:[%s5 + $0xc] sm:$0xf]
        %v1396 = vld [vmem:[%s5 + $0x10] sm:$0xf]
        %v1397 = vld [vmem:[%s5 + $0x14] sm:$0xf]
        %v1398 = vld [vmem:[%s5 + $0x18] sm:$0xf]
        %v1399 = vld [vmem:[%s5 + $0x1c] sm:$0xf]
        %v1400 = vld [vmem:[%s5 + $0x20] sm:$0xf]
        %v1401 = vld [vmem:[%s5 + $0x24] sm:$0xf]
        %v1402 = vld [vmem:[%s5 + $0x28] sm:$0xf]
        %v1403 = vld [vmem:[%s5 + $0x2c] sm:$0xf]
        %v1404 = vld [vmem:[%s5 + $0x30] sm:$0xf]
        %v1405 = vld [vmem:[%s5 + $0x34] sm:$0xf]
        %v1406 = vld [vmem:[%s5 + $0x38] sm:$0xf]
        %v1407 = vld [vmem:[%s5 + $0x3c] sm:$0xf]
        %v1408 = vld [vmem:[%s6] sm:$0x1]
        %v1410 = vperm.slane %v1408, 0
        %v1412 = vunpack.c.h.b16 %v1043
        %v1413 = vunpack.c.h.b16 %v1045
        %v1414 = vunpack.c.h.b16 %v1047
        %v1415 = vunpack.c.h.b16 %v1049
        %v1416 = vunpack.c.h.b16 %v1051
        %v1417 = vunpack.c.h.b16 %v1053
        %v1418 = vunpack.c.h.b16 %v1055
        %v1419 = vunpack.c.h.b16 %v1057
        %v1420 = vunpack.c.h.b16 %v1059
        %v1421 = vunpack.c.h.b16 %v1061
        %v1422 = vunpack.c.h.b16 %v1063
        %v1423 = vunpack.c.h.b16 %v1065
        %v1424 = vunpack.c.h.b16 %v1067
        %v1425 = vunpack.c.h.b16 %v1069
        %v1426 = vunpack.c.h.b16 %v1071
        %v1427 = vunpack.c.h.b16 %v1073
        %v1428 = vunpack.c.h.b16 %v1075
        %v1429 = vunpack.c.h.b16 %v1077
        %v1430 = vunpack.c.h.b16 %v1079
        %v1431 = vunpack.c.h.b16 %v1081
        %v1432 = vunpack.c.h.b16 %v1083
        %v1433 = vunpack.c.h.b16 %v1085
        %v1434 = vunpack.c.h.b16 %v1087
        %v1435 = vunpack.c.h.b16 %v1089
        %v1436 = vunpack.c.h.b16 %v1091
        %v1437 = vunpack.c.h.b16 %v1093
        %v1438 = vunpack.c.h.b16 %v1095
        %v1439 = vunpack.c.h.b16 %v1097
        %v1440 = vunpack.c.h.b16 %v1099
        %v1441 = vunpack.c.h.b16 %v1101
        %v1442 = vunpack.c.h.b16 %v1103
        %v1443 = vunpack.c.h.b16 %v1105
        %v1444 = vpack.c.b16 %v1413, %v1412
        %v1445 = vpack.c.b16 %v1415, %v1414
        %v1446 = vpack.c.b16 %v1417, %v1416
        %v1447 = vpack.c.b16 %v1419, %v1418
        %v1448 = vpack.c.b16 %v1421, %v1420
        %v1449 = vpack.c.b16 %v1423, %v1422
        %v1450 = vpack.c.b16 %v1425, %v1424
        %v1451 = vpack.c.b16 %v1427, %v1426
        %v1452 = vpack.c.b16 %v1429, %v1428
        %v1453 = vpack.c.b16 %v1431, %v1430
        %v1454 = vpack.c.b16 %v1433, %v1432
        %v1455 = vpack.c.b16 %v1435, %v1434
        %v1456 = vpack.c.b16 %v1437, %v1436
        %v1457 = vpack.c.b16 %v1439, %v1438
        %v1458 = vpack.c.b16 %v1441, %v1440
        %v1459 = vpack.c.b16 %v1443, %v1442
        %v1492 = vunpack.c.l.b16 %v1392
        %v1493 = vunpack.c.l.b16 %v1393
        %v1494 = vunpack.c.l.b16 %v1394
        %v1495 = vunpack.c.l.b16 %v1395
        %v1496 = vunpack.c.l.b16 %v1396
        %v1497 = vunpack.c.l.b16 %v1397
        %v1498 = vunpack.c.l.b16 %v1398
        %v1499 = vunpack.c.l.b16 %v1399
        %v1500 = vunpack.c.l.b16 %v1400
        %v1501 = vunpack.c.l.b16 %v1401
        %v1502 = vunpack.c.l.b16 %v1402
        %v1503 = vunpack.c.l.b16 %v1403
        %v1504 = vunpack.c.l.b16 %v1404
        %v1505 = vunpack.c.l.b16 %v1405
        %v1506 = vunpack.c.l.b16 %v1406
        %v1507 = vunpack.c.l.b16 %v1407
        %v1508 = vpack.c.b16 %v1493, %v1492
        %v1509 = vpack.c.b16 %v1495, %v1494
        %v1510 = vpack.c.b16 %v1497, %v1496
        %v1511 = vpack.c.b16 %v1499, %v1498
        %v1512 = vpack.c.b16 %v1501, %v1500
        %v1513 = vpack.c.b16 %v1503, %v1502
        %v1514 = vpack.c.b16 %v1505, %v1504
        %v1515 = vpack.c.b16 %v1507, %v1506
        %1524 = vmatpush.bf16.msra.mxu0 %v1515
        %1525 = vmatpush.bf16.msra.mxu0 %v1514
        %1526 = vmatpush.bf16.msra.mxu0 %v1513
        %1527 = vmatpush.bf16.msra.mxu0 %v1512
        %1528 = vmatpush.bf16.msra.mxu0 %v1511
        %1529 = vmatpush.bf16.msra.mxu0 %v1510
        %1530 = vmatpush.bf16.msra.mxu0 %v1509
        %1531 = vmatpush.bf16.msra.mxu0 %v1508
        %1532 = vmatmul.bf16.gmra.mxu0 %v1444
        %v1533 = vpop.f32.mrf.mxu0
        %v1534 = vadd.f32 %v1410, %v1533
        %v1535 = vpop.f32.mrf.mxu0
        %v1536 = vadd.f32 %v1410, %v1535
        %1537 = vmatmul.bf16.gmra.mxu0 %v1445
        %v1538 = vpop.f32.mrf.mxu0
        %v1539 = vadd.f32 %v1410, %v1538
        %v1540 = vpop.f32.mrf.mxu0
        %v1541 = vadd.f32 %v1410, %v1540
        %1542 = vmatmul.bf16.gmra.mxu0 %v1446
        %v1543 = vpop.f32.mrf.mxu0
        %v1544 = vadd.f32 %v1410, %v1543
        %v1545 = vpop.f32.mrf.mxu0
        %v1546 = vadd.f32 %v1410, %v1545
        %1547 = vmatmul.bf16.gmra.mxu0 %v1447
        %v1548 = vpop.f32.mrf.mxu0
        %v1549 = vadd.f32 %v1410, %v1548
        %v1550 = vpop.f32.mrf.mxu0
        %v1551 = vadd.f32 %v1410, %v1550
        %1552 = vmatmul.bf16.gmra.mxu0 %v1448
        %v1553 = vpop.f32.mrf.mxu0
        %v1554 = vadd.f32 %v1410, %v1553
        %v1555 = vpop.f32.mrf.mxu0
        %v1556 = vadd.f32 %v1410, %v1555
        %1557 = vmatmul.bf16.gmra.mxu0 %v1449
        %v1558 = vpop.f32.mrf.mxu0
        %v1559 = vadd.f32 %v1410, %v1558
        %v1560 = vpop.f32.mrf.mxu0
        %v1561 = vadd.f32 %v1410, %v1560
        %1562 = vmatmul.bf16.gmra.mxu0 %v1450
        %v1563 = vpop.f32.mrf.mxu0
        %v1564 = vadd.f32 %v1410, %v1563
        %v1565 = vpop.f32.mrf.mxu0
        %v1566 = vadd.f32 %v1410, %v1565
        %1567 = vmatmul.bf16.gmra.mxu0 %v1451
        %v1568 = vpop.f32.mrf.mxu0
        %v1569 = vadd.f32 %v1410, %v1568
        %v1570 = vpop.f32.mrf.mxu0
        %v1571 = vadd.f32 %v1410, %v1570
        %1572 = vmatmul.bf16.gmra.mxu0 %v1452
        %v1573 = vpop.f32.mrf.mxu0
        %v1574 = vadd.f32 %v1410, %v1573
        %v1575 = vpop.f32.mrf.mxu0
        %v1576 = vadd.f32 %v1410, %v1575
        %1577 = vmatmul.bf16.gmra.mxu0 %v1453
        %v1578 = vpop.f32.mrf.mxu0
        %v1579 = vadd.f32 %v1410, %v1578
        %v1580 = vpop.f32.mrf.mxu0
        %v1581 = vadd.f32 %v1410, %v1580
        %1582 = vmatmul.bf16.gmra.mxu0 %v1454
        %v1583 = vpop.f32.mrf.mxu0
        %v1584 = vadd.f32 %v1410, %v1583
        %v1585 = vpop.f32.mrf.mxu0
        %v1586 = vadd.f32 %v1410, %v1585
        %1587 = vmatmul.bf16.gmra.mxu0 %v1455
        %v1588 = vpop.f32.mrf.mxu0
        %v1589 = vadd.f32 %v1410, %v1588
        %v1590 = vpop.f32.mrf.mxu0
        %v1591 = vadd.f32 %v1410, %v1590
        %1592 = vmatmul.bf16.gmra.mxu0 %v1456
        %v1593 = vpop.f32.mrf.mxu0
        %v1594 = vadd.f32 %v1410, %v1593
        %v1595 = vpop.f32.mrf.mxu0
        %v1596 = vadd.f32 %v1410, %v1595
        %1597 = vmatmul.bf16.gmra.mxu0 %v1457
        %v1598 = vpop.f32.mrf.mxu0
        %v1599 = vadd.f32 %v1410, %v1598
        %v1600 = vpop.f32.mrf.mxu0
        %v1601 = vadd.f32 %v1410, %v1600
        %1602 = vmatmul.bf16.gmra.mxu0 %v1458
        %v1603 = vpop.f32.mrf.mxu0
        %v1604 = vadd.f32 %v1410, %v1603
        %v1605 = vpop.f32.mrf.mxu0
        %v1606 = vadd.f32 %v1410, %v1605
        %1607 = vmatmul.bf16.gmra.mxu0 %v1459
        %v1608 = vpop.f32.mrf.mxu0
        %v1609 = vadd.f32 %v1410, %v1608
        %v1610 = vpop.f32.mrf.mxu0
        %v1611 = vadd.f32 %v1410, %v1610
        %1612 = vdwg.mxu0
        %1613 = vst [vmem:[%s326 + $0x8] sm:$0xff] %v1534
        %1614 = vst [vmem:[%s326 + $0x20] sm:$0xff] %v1536
        %1615 = vst [vmem:[%s326 + $0x38] sm:$0xff] %v1539
        %1616 = vst [vmem:[%s326 + $0x50] sm:$0xff] %v1541
        %1617 = vst [vmem:[%s326 + $0x68] sm:$0xff] %v1544
        %1618 = vst [vmem:[%s326 + $0x80] sm:$0xff] %v1546
        %1619 = vst [vmem:[%s326 + $0x98] sm:$0xff] %v1549
        %1620 = vst [vmem:[%s326 + $0xb0] sm:$0xff] %v1551
        %1621 = vst [vmem:[%s326 + $0xc8] sm:$0xff] %v1554
        %1622 = vst [vmem:[%s326 + $0xe0] sm:$0xff] %v1556
        %1623 = vst [vmem:[%s326 + $0xf8] sm:$0xff] %v1559
        %1624 = vst [vmem:[%s326 + $0x110] sm:$0xff] %v1561
        %1625 = vst [vmem:[%s326 + $0x128] sm:$0xff] %v1564
        %1626 = vst [vmem:[%s326 + $0x140] sm:$0xff] %v1566
        %1627 = vst [vmem:[%s326 + $0x158] sm:$0xff] %v1569
        %1628 = vst [vmem:[%s326 + $0x170] sm:$0xff] %v1571
        %1629 = vst [vmem:[%s326 + $0x188] sm:$0xff] %v1574
        %1630 = vst [vmem:[%s326 + $0x1a0] sm:$0xff] %v1576
        %1631 = vst [vmem:[%s326 + $0x1b8] sm:$0xff] %v1579
        %1632 = vst [vmem:[%s326 + $0x1d0] sm:$0xff] %v1581
        %1633 = vst [vmem:[%s326 + $0x1e8] sm:$0xff] %v1584
        %1634 = vst [vmem:[%s326 + $0x200] sm:$0xff] %v1586
        %1635 = vst [vmem:[%s326 + $0x218] sm:$0xff] %v1589
        %1636 = vst [vmem:[%s326 + $0x230] sm:$0xff] %v1591
        %1637 = vst [vmem:[%s326 + $0x248] sm:$0xff] %v1594
        %1638 = vst [vmem:[%s326 + $0x260] sm:$0xff] %v1596
        %1639 = vst [vmem:[%s326 + $0x278] sm:$0xff] %v1599
        %1640 = vst [vmem:[%s326 + $0x290] sm:$0xff] %v1601
        %1641 = vst [vmem:[%s326 + $0x2a8] sm:$0xff] %v1604
        %1642 = vst [vmem:[%s326 + $0x2c0] sm:$0xff] %v1606
        %1643 = vst [vmem:[%s326 + $0x2d8] sm:$0xff] %v1609
        %1644 = vst [vmem:[%s326 + $0x2f0] sm:$0xff] %v1611
        %v1645 = vld [vmem:[%s7] sm:$0xf]
        %v1646 = vld [vmem:[%s7 + $0x4] sm:$0xf]
        %v1647 = vld [vmem:[%s7 + $0x8] sm:$0xf]
        %v1648 = vld [vmem:[%s7 + $0xc] sm:$0xf]
        %v1649 = vld [vmem:[%s7 + $0x10] sm:$0xf]
        %v1650 = vld [vmem:[%s7 + $0x14] sm:$0xf]
        %v1651 = vld [vmem:[%s7 + $0x18] sm:$0xf]
        %v1652 = vld [vmem:[%s7 + $0x1c] sm:$0xf]
        %v1653 = vld [vmem:[%s7 + $0x20] sm:$0xf]
        %v1654 = vld [vmem:[%s7 + $0x24] sm:$0xf]
        %v1655 = vld [vmem:[%s7 + $0x28] sm:$0xf]
        %v1656 = vld [vmem:[%s7 + $0x2c] sm:$0xf]
        %v1657 = vld [vmem:[%s7 + $0x30] sm:$0xf]
        %v1658 = vld [vmem:[%s7 + $0x34] sm:$0xf]
        %v1659 = vld [vmem:[%s7 + $0x38] sm:$0xf]
        %v1660 = vld [vmem:[%s7 + $0x3c] sm:$0xf]
        %v1661 = vld [vmem:[%s8] sm:$0x1]
        %v1663 = vperm.slane %v1661, 0
        %v1697 = vunpack.c.l.b16 %v1044
        %v1698 = vunpack.c.l.b16 %v1046
        %v1699 = vunpack.c.l.b16 %v1048
        %v1700 = vunpack.c.l.b16 %v1050
        %v1701 = vunpack.c.l.b16 %v1052
        %v1702 = vunpack.c.l.b16 %v1054
        %v1703 = vunpack.c.l.b16 %v1056
        %v1704 = vunpack.c.l.b16 %v1058
        %v1705 = vunpack.c.l.b16 %v1060
        %v1706 = vunpack.c.l.b16 %v1062
        %v1707 = vunpack.c.l.b16 %v1064
        %v1708 = vunpack.c.l.b16 %v1066
        %v1709 = vunpack.c.l.b16 %v1068
        %v1710 = vunpack.c.l.b16 %v1070
        %v1711 = vunpack.c.l.b16 %v1072
        %v1712 = vunpack.c.l.b16 %v1074
        %v1713 = vunpack.c.l.b16 %v1076
        %v1714 = vunpack.c.l.b16 %v1078
        %v1715 = vunpack.c.l.b16 %v1080
        %v1716 = vunpack.c.l.b16 %v1082
        %v1717 = vunpack.c.l.b16 %v1084
        %v1718 = vunpack.c.l.b16 %v1086
        %v1719 = vunpack.c.l.b16 %v1088
        %v1720 = vunpack.c.l.b16 %v1090
        %v1721 = vunpack.c.l.b16 %v1092
        %v1722 = vunpack.c.l.b16 %v1094
        %v1723 = vunpack.c.l.b16 %v1096
        %v1724 = vunpack.c.l.b16 %v1098
        %v1725 = vunpack.c.l.b16 %v1100
        %v1726 = vunpack.c.l.b16 %v1102
        %v1727 = vunpack.c.l.b16 %v1104
        %v1728 = vunpack.c.l.b16 %v1106
        %v1729 = vpack.c.b16 %v1698, %v1697
        %v1730 = vpack.c.b16 %v1700, %v1699
        %v1731 = vpack.c.b16 %v1702, %v1701
        %v1732 = vpack.c.b16 %v1704, %v1703
        %v1733 = vpack.c.b16 %v1706, %v1705
        %v1734 = vpack.c.b16 %v1708, %v1707
        %v1735 = vpack.c.b16 %v1710, %v1709
        %v1736 = vpack.c.b16 %v1712, %v1711
        %v1737 = vpack.c.b16 %v1714, %v1713
        %v1738 = vpack.c.b16 %v1716, %v1715
        %v1739 = vpack.c.b16 %v1718, %v1717
        %v1740 = vpack.c.b16 %v1720, %v1719
        %v1741 = vpack.c.b16 %v1722, %v1721
        %v1742 = vpack.c.b16 %v1724, %v1723
        %v1743 = vpack.c.b16 %v1726, %v1725
        %v1744 = vpack.c.b16 %v1728, %v1727
        %v1777 = vunpack.c.l.b16 %v1645
        %v1778 = vunpack.c.l.b16 %v1646
        %v1779 = vunpack.c.l.b16 %v1647
        %v1780 = vunpack.c.l.b16 %v1648
        %v1781 = vunpack.c.l.b16 %v1649
        %v1782 = vunpack.c.l.b16 %v1650
        %v1783 = vunpack.c.l.b16 %v1651
        %v1784 = vunpack.c.l.b16 %v1652
        %v1785 = vunpack.c.l.b16 %v1653
        %v1786 = vunpack.c.l.b16 %v1654
        %v1787 = vunpack.c.l.b16 %v1655
        %v1788 = vunpack.c.l.b16 %v1656
        %v1789 = vunpack.c.l.b16 %v1657
        %v1790 = vunpack.c.l.b16 %v1658
        %v1791 = vunpack.c.l.b16 %v1659
        %v1792 = vunpack.c.l.b16 %v1660
        %v1793 = vpack.c.b16 %v1778, %v1777
        %v1794 = vpack.c.b16 %v1780, %v1779
        %v1795 = vpack.c.b16 %v1782, %v1781
        %v1796 = vpack.c.b16 %v1784, %v1783
        %v1797 = vpack.c.b16 %v1786, %v1785
        %v1798 = vpack.c.b16 %v1788, %v1787
        %v1799 = vpack.c.b16 %v1790, %v1789
        %v1800 = vpack.c.b16 %v1792, %v1791
        %1809 = vmatpush.bf16.msra.mxu0 %v1800
        %1810 = vmatpush.bf16.msra.mxu0 %v1799
        %1811 = vmatpush.bf16.msra.mxu0 %v1798
        %1812 = vmatpush.bf16.msra.mxu0 %v1797
        %1813 = vmatpush.bf16.msra.mxu0 %v1796
        %1814 = vmatpush.bf16.msra.mxu0 %v1795
        %1815 = vmatpush.bf16.msra.mxu0 %v1794
        %1816 = vmatpush.bf16.msra.mxu0 %v1793
        %1817 = vmatmul.bf16.gmra.mxu0 %v1729
        %v1818 = vpop.f32.mrf.mxu0
        %v1819 = vadd.f32 %v1663, %v1818
        %v1820 = vpop.f32.mrf.mxu0
        %v1821 = vadd.f32 %v1663, %v1820
        %1822 = vmatmul.bf16.gmra.mxu0 %v1730
        %v1823 = vpop.f32.mrf.mxu0
        %v1824 = vadd.f32 %v1663, %v1823
        %v1825 = vpop.f32.mrf.mxu0
        %v1826 = vadd.f32 %v1663, %v1825
        %1827 = vmatmul.bf16.gmra.mxu0 %v1731
        %v1828 = vpop.f32.mrf.mxu0
        %v1829 = vadd.f32 %v1663, %v1828
        %v1830 = vpop.f32.mrf.mxu0
        %v1831 = vadd.f32 %v1663, %v1830
        %1832 = vmatmul.bf16.gmra.mxu0 %v1732
        %v1833 = vpop.f32.mrf.mxu0
        %v1834 = vadd.f32 %v1663, %v1833
        %v1835 = vpop.f32.mrf.mxu0
        %v1836 = vadd.f32 %v1663, %v1835
        %1837 = vmatmul.bf16.gmra.mxu0 %v1733
        %v1838 = vpop.f32.mrf.mxu0
        %v1839 = vadd.f32 %v1663, %v1838
        %v1840 = vpop.f32.mrf.mxu0
        %v1841 = vadd.f32 %v1663, %v1840
        %1842 = vmatmul.bf16.gmra.mxu0 %v1734
        %v1843 = vpop.f32.mrf.mxu0
        %v1844 = vadd.f32 %v1663, %v1843
        %v1845 = vpop.f32.mrf.mxu0
        %v1846 = vadd.f32 %v1663, %v1845
        %1847 = vmatmul.bf16.gmra.mxu0 %v1735
        %v1848 = vpop.f32.mrf.mxu0
        %v1849 = vadd.f32 %v1663, %v1848
        %v1850 = vpop.f32.mrf.mxu0
        %v1851 = vadd.f32 %v1663, %v1850
        %1852 = vmatmul.bf16.gmra.mxu0 %v1736
        %v1853 = vpop.f32.mrf.mxu0
        %v1854 = vadd.f32 %v1663, %v1853
        %v1855 = vpop.f32.mrf.mxu0
        %v1856 = vadd.f32 %v1663, %v1855
        %1857 = vmatmul.bf16.gmra.mxu0 %v1737
        %v1858 = vpop.f32.mrf.mxu0
        %v1859 = vadd.f32 %v1663, %v1858
        %v1860 = vpop.f32.mrf.mxu0
        %v1861 = vadd.f32 %v1663, %v1860
        %1862 = vmatmul.bf16.gmra.mxu0 %v1738
        %v1863 = vpop.f32.mrf.mxu0
        %v1864 = vadd.f32 %v1663, %v1863
        %v1865 = vpop.f32.mrf.mxu0
        %v1866 = vadd.f32 %v1663, %v1865
        %1867 = vmatmul.bf16.gmra.mxu0 %v1739
        %v1868 = vpop.f32.mrf.mxu0
        %v1869 = vadd.f32 %v1663, %v1868
        %v1870 = vpop.f32.mrf.mxu0
        %v1871 = vadd.f32 %v1663, %v1870
        %1872 = vmatmul.bf16.gmra.mxu0 %v1740
        %v1873 = vpop.f32.mrf.mxu0
        %v1874 = vadd.f32 %v1663, %v1873
        %v1875 = vpop.f32.mrf.mxu0
        %v1876 = vadd.f32 %v1663, %v1875
        %1877 = vmatmul.bf16.gmra.mxu0 %v1741
        %v1878 = vpop.f32.mrf.mxu0
        %v1879 = vadd.f32 %v1663, %v1878
        %v1880 = vpop.f32.mrf.mxu0
        %v1881 = vadd.f32 %v1663, %v1880
        %1882 = vmatmul.bf16.gmra.mxu0 %v1742
        %v1883 = vpop.f32.mrf.mxu0
        %v1884 = vadd.f32 %v1663, %v1883
        %v1885 = vpop.f32.mrf.mxu0
        %v1886 = vadd.f32 %v1663, %v1885
        %1887 = vmatmul.bf16.gmra.mxu0 %v1743
        %v1888 = vpop.f32.mrf.mxu0
        %v1889 = vadd.f32 %v1663, %v1888
        %v1890 = vpop.f32.mrf.mxu0
        %v1891 = vadd.f32 %v1663, %v1890
        %1892 = vmatmul.bf16.gmra.mxu0 %v1744
        %v1893 = vpop.f32.mrf.mxu0
        %v1894 = vadd.f32 %v1663, %v1893
        %v1895 = vpop.f32.mrf.mxu0
        %v1896 = vadd.f32 %v1663, %v1895
        %1897 = vdwg.mxu0
        %1898 = vst [vmem:[%s326 + $0x10] sm:$0xff] %v1819
        %1899 = vst [vmem:[%s326 + $0x28] sm:$0xff] %v1821
        %1900 = vst [vmem:[%s326 + $0x40] sm:$0xff] %v1824
        %1901 = vst [vmem:[%s326 + $0x58] sm:$0xff] %v1826
        %1902 = vst [vmem:[%s326 + $0x70] sm:$0xff] %v1829
        %1903 = vst [vmem:[%s326 + $0x88] sm:$0xff] %v1831
        %1904 = vst [vmem:[%s326 + $0xa0] sm:$0xff] %v1834
        %1905 = vst [vmem:[%s326 + $0xb8] sm:$0xff] %v1836
        %1906 = vst [vmem:[%s326 + $0xd0] sm:$0xff] %v1839
        %1907 = vst [vmem:[%s326 + $0xe8] sm:$0xff] %v1841
        %1908 = vst [vmem:[%s326 + $0x100] sm:$0xff] %v1844
        %1909 = vst [vmem:[%s326 + $0x118] sm:$0xff] %v1846
        %1910 = vst [vmem:[%s326 + $0x130] sm:$0xff] %v1849
        %1911 = vst [vmem:[%s326 + $0x148] sm:$0xff] %v1851
        %1912 = vst [vmem:[%s326 + $0x160] sm:$0xff] %v1854
        %1913 = vst [vmem:[%s326 + $0x178] sm:$0xff] %v1856
        %1914 = vst [vmem:[%s326 + $0x190] sm:$0xff] %v1859
        %1915 = vst [vmem:[%s326 + $0x1a8] sm:$0xff] %v1861
        %1916 = vst [vmem:[%s326 + $0x1c0] sm:$0xff] %v1864
        %1917 = vst [vmem:[%s326 + $0x1d8] sm:$0xff] %v1866
        %1918 = vst [vmem:[%s326 + $0x1f0] sm:$0xff] %v1869
        %1919 = vst [vmem:[%s326 + $0x208] sm:$0xff] %v1871
        %1920 = vst [vmem:[%s326 + $0x220] sm:$0xff] %v1874
        %1921 = vst [vmem:[%s326 + $0x238] sm:$0xff] %v1876
        %1922 = vst [vmem:[%s326 + $0x250] sm:$0xff] %v1879
        %1923 = vst [vmem:[%s326 + $0x268] sm:$0xff] %v1881
        %1924 = vst [vmem:[%s326 + $0x280] sm:$0xff] %v1884
        %1925 = vst [vmem:[%s326 + $0x298] sm:$0xff] %v1886
        %1926 = vst [vmem:[%s326 + $0x2b0] sm:$0xff] %v1889
        %1927 = vst [vmem:[%s326 + $0x2c8] sm:$0xff] %v1891
        %1928 = vst [vmem:[%s326 + $0x2e0] sm:$0xff] %v1894
        %1929 = vst [vmem:[%s326 + $0x2f8] sm:$0xff] %v1896
        %s1930 = sand.u32 %s225, 1
        %s1931 = scalar_lea.sflag [#allocation3], %s1930
        %s1932 = sand.u32 %s225, 1
        %s1933 = smul.addr %s1932, 768
        %s1934 = scalar_lea.vmem [#allocation2], %s1933
        // Predicated region
        $region57: #{tpu_custom_call.1} parent=55 // pred_check
          %p1935 = pneg %p235
        $region58: #{tpu_custom_call.1} parent=55 // pred_check_branch
          %1937 = sbr.rel (%p1935) target = $region60
        $region59: #{tpu_custom_call.1} parent=55 // pred_region
          %s1938 = smul.u32 32, %s23
          %1940 = vsyncadd %s1931, 0
          %s1941 = smul.addr %s1938, 3
          %s1942 = smul.addr %s1941, 8
          %s1943 = scalar_lea.hbm %s9, %s1942
          %s1944 = sshll.u32 %s1934, 4
          %s1945 = int_to_ptr.vmem [resolvable:$true] %s1944
          %s1946 = sshll.u32 %s1943, 4
          %s1947 = int_to_ptr.hbm [resolvable:$true] %s1946
          %1952 = dma.vmem_to_hbm [thread:$0]  %s1945, 12288, %s1947, %s1931, 384, 384, 24
        $region60: #{tpu_custom_call.1} parent=55 // pred_fallthru
          _
      $region56: #{tpu_custom_call.1} parent=5 // pred_fallthru
        _
      %p1953 = scmp.le.s32.totalorder 2, %s18
      // Predicated region
      $region61: #{tpu_custom_call.1} parent=5 // pred_check
        %p1954 = pneg %p1953
      $region62: #{tpu_custom_call.1} parent=5 // pred_check_branch
        %1956 = sbr.rel (%p1954) target = $region64
      $region63: #{tpu_custom_call.1} parent=5 // pred_region
        %s1957 = ssub.s32 %s18, 2
        // Predicated region
        $region65: #{tpu_custom_call.1} parent=63 // pred_check
          %p1958 = pneg %p241
        $region66: #{tpu_custom_call.1} parent=63 // pred_check_branch
          %1960 = sbr.rel (%p1958) target = $region68
        $region67: #{tpu_custom_call.1} parent=63 // pred_region
          %s1961 = sand.u32 %s226, 1
          %s1962 = scalar_lea.sflag [#allocation3], %s1961
          %s1963 = sand.u32 %s226, 1
          %s1964 = smul.addr %s1963, 768
          %s1965 = scalar_lea.vmem [#allocation2], %s1964
          %1967 = dma.done %s1962, 12288
        $region68: #{tpu_custom_call.1} parent=63 // pred_fallthru
          _
      $region64: #{tpu_custom_call.1} parent=5 // pred_fallthru
        _
    $region6: #{tpu_custom_call.1} parent=1 // loop_footer
      %s22 = sadd.s32 1, %s18
    $region7: #{tpu_custom_call.1} parent=1 // loop_footer_branch
      %17 = sbr.rel target = $region3
    $region8: #{tpu_custom_call.1} parent=1 // loop_exit
      _
    %1968 = vsyncpa [#allocation3], 1
    %s1969 = scalar_lea.sflag [#allocation3], 1
    %1970 = vsyncpa %s1969, 1

</llo_original>
